<compile_context>
chip_gen: v5e
topology: v5e:2x2
jax: 0.10.0
libtpu: 0.0.40
codegen_flags: <defaults>
</compile_context>

<pallas_src>
import numpy as np
import jax
import jax.numpy as jnp
from jax import lax
from jax.experimental import pallas as pl
from jax.experimental.pallas import tpu as pltpu

# Geometry fixed by the PyTorch module (fc1 = 32*4*4 -> 28x28x1 input).
P1, K1, K1P, C1 = 144, 25, 32, 16   # conv1: 12*12 pooled positions, 5*5*1 patch (pad->32), 16 ch
P2, K2, C2 = 16, 400, 32            # conv2: 4*4 pooled positions, 5*5*16 patch, 32 ch
N_OUT, NF_PAD = 10, 128             # fc1 outputs, lane-padded to 128

DEFAULT_BLK_B = 32                  # batch block per grid step (VMEM-safe on v5e/v6e/v7x)


def _round_up(n, m):
    return (n + m - 1) // m * m


# ----------------------------------------------------------------------------
# Pallas kernels
# ----------------------------------------------------------------------------
def _conv1_kernel(p_ref, w_ref, b_ref, o_ref):
    """conv1 as one GEMM over the 4 stacked pooling branches + bias + ReLU + 2x2 maxpool.

    p_ref: (BLK, 4, P1, K1P) im2col patches grouped by pooling offset.
    w_ref: (K1P, C1)   b_ref: (1, C1)   o_ref: (BLK, P1, C1)
    """
    blk = p_ref.shape[0]
    x = p_ref[...].reshape(blk * 4 * P1, K1P)          # layout-preserving merge
    y = jnp.dot(x, w_ref[...], preferred_element_type=jnp.float32)
    y = y.reshape(blk, 4, P1, C1)
    m = jnp.maximum(jnp.maximum(y[:, 0], y[:, 1]), jnp.maximum(y[:, 2], y[:, 3]))
    o_ref[...] = jnp.maximum(m + b_ref[...], 0.0).astype(o_ref.dtype)


def _conv2_fc_kernel(p_ref, w_ref, b_ref, wf_ref, bf_ref, o_ref):
    """conv2 GEMM + bias + ReLU + 2x2 maxpool, with the 512->10 FC fused in.

    p_ref: (BLK, 4, P2, K2)   w_ref: (K2, C2)   b_ref: (1, C2)
    wf_ref: (P2, C2, NF_PAD)  bf_ref: (1, NF_PAD)   o_ref: (BLK, NF_PAD)
    """
    blk = p_ref.shape[0]
    x = p_ref[...].reshape(blk * 4 * P2, K2)
    y = jnp.dot(x, w_ref[...], preferred_element_type=jnp.float32)
    y = y.reshape(blk, 4, P2, C2)
    m = jnp.maximum(jnp.maximum(y[:, 0], y[:, 1]), jnp.maximum(y[:, 2], y[:, 3]))
    h = jnp.maximum(m + b_ref[...], 0.0)               # (blk, P2, C2) pooled activations

    # Fused FC: out[b, o] = sum_{p, c} h[b, p, c] * Wfc'[p, c, o]  (weight already
    # permuted in glue to absorb the PyTorch NCHW flatten order). Contracted as a
    # static unroll over the 16 pooled positions to avoid a non-trivial reshape.
    wf = wf_ref[...]                                   # (P2, C2, NF_PAD)
    acc = jnp.zeros((blk, NF_PAD), jnp.float32)
    for pos in range(P2):
        acc = acc + jnp.dot(h[:, pos, :], wf[pos], preferred_element_type=jnp.float32)
    o_ref[...] = (acc + bf_ref[...]).astype(o_ref.dtype)


# ----------------------------------------------------------------------------
# pallas_call wrappers
# ----------------------------------------------------------------------------
def conv1_relu_pool(pat, w, b, blk_b):
    Bp = pat.shape[0]
    flops = 2 * Bp * 4 * P1 * K1P * C1
    bytes_accessed = 4 * (Bp * 4 * P1 * K1P + K1P * C1 + C1 + Bp * P1 * C1)
    return pl.pallas_call(
        _conv1_kernel,
        out_shape=jax.ShapeDtypeStruct((Bp, P1, C1), jnp.float32),
        grid=(Bp // blk_b,),
        in_specs=[pl.BlockSpec((blk_b, 4, P1, K1P), lambda i: (i, 0, 0, 0)),
                  pl.BlockSpec((K1P, C1), lambda i: (0, 0)),
                  pl.BlockSpec((1, C1), lambda i: (0, 0))],
        out_specs=pl.BlockSpec((blk_b, P1, C1), lambda i: (i, 0, 0)),
        compiler_params=pltpu.CompilerParams(dimension_semantics=("parallel",)),
        cost_estimate=pl.CostEstimate(flops=flops, transcendentals=0,
                                      bytes_accessed=bytes_accessed),
    )(pat, w, b)


def conv2_pool_fc(pat, w, b, wf, bf, blk_b):
    Bp = pat.shape[0]
    flops = 2 * Bp * 4 * P2 * K2 * C2 + 2 * Bp * P2 * C2 * NF_PAD
    bytes_accessed = 4 * (Bp * 4 * P2 * K2 + K2 * C2 + C2
                          + P2 * C2 * NF_PAD + NF_PAD + Bp * NF_PAD)
    return pl.pallas_call(
        _conv2_fc_kernel,
        out_shape=jax.ShapeDtypeStruct((Bp, NF_PAD), jnp.float32),
        grid=(Bp // blk_b,),
        in_specs=[pl.BlockSpec((blk_b, 4, P2, K2), lambda i: (i, 0, 0, 0)),
                  pl.BlockSpec((K2, C2), lambda i: (0, 0)),
                  pl.BlockSpec((1, C2), lambda i: (0, 0)),
                  pl.BlockSpec((P2, C2, NF_PAD), lambda i: (0, 0, 0)),
                  pl.BlockSpec((1, NF_PAD), lambda i: (0, 0))],
        out_specs=pl.BlockSpec((blk_b, NF_PAD), lambda i: (i, 0)),
        compiler_params=pltpu.CompilerParams(dimension_semantics=("parallel",)),
        cost_estimate=pl.CostEstimate(flops=flops, transcendentals=0,
                                      bytes_accessed=bytes_accessed),
    )(pat, w, b, wf, bf)


# ----------------------------------------------------------------------------
# Plain-JAX glue: im2col (static slices only, no gathers), grouped by 2x2 pool
# ----------------------------------------------------------------------------
def conv1_patches(x):
    """x: (B, 1, 28, 28) -> (B, 4, 144, 32); branch = di*2+dj, pos = pi*12+pj, K padded 25->32."""
    B = x.shape[0]
    x2 = x[:, 0]                                                    # (B, 28, 28)
    slabs = [x2[:, ky:ky + 24, kx:kx + 24] for ky in range(5) for kx in range(5)]
    pat = jnp.stack(slabs, axis=-1)                                 # (B, 24, 24, 25)
    pat = pat.reshape(B, 12, 2, 12, 2, K1)                          # [b, pi, di, pj, dj, k]
    pat = jnp.transpose(pat, (0, 2, 4, 1, 3, 5))                    # [b, di, dj, pi, pj, k]
    pat = pat.reshape(B, 4, P1, K1)
    return jnp.pad(pat, ((0, 0), (0, 0), (0, 0), (0, K1P - K1)))


def conv2_patches(h1):
    """h1: (B, 144, 16) == NHWC (B,12,12,16) -> (B, 4, 16, 400); patch order (ci, ky, kx)."""
    B = h1.shape[0]
    h = h1.reshape(B, 12, 12, C1)
    slabs = [h[:, ky:ky + 8, kx:kx + 8, :] for ky in range(5) for kx in range(5)]
    pat = jnp.stack(slabs, axis=3)                                  # (B, 8, 8, 25, 16)
    pat = jnp.transpose(pat, (0, 1, 2, 4, 3))                       # (B, 8, 8, 16, 25)
    pat = pat.reshape(B, 8, 8, K2)                                  # k = ci*25 + ky*5 + kx
    pat = pat.reshape(B, 4, 2, 4, 2, K2)                            # [b, pi, di, pj, dj, k]
    pat = jnp.transpose(pat, (0, 2, 4, 1, 3, 5))                    # [b, di, dj, pi, pj, k]
    return pat.reshape(B, 4, P2, K2)


# ----------------------------------------------------------------------------
# Model
# ----------------------------------------------------------------------------
def init_params(key):
    ks = jax.random.split(key, 6)

    def u(k, shape, fan_in):
        bound = 1.0 / np.sqrt(fan_in)
        return jax.random.uniform(k, shape, jnp.float32, -bound, bound)

    w1 = u(ks[0], (16, 1, 5, 5), 25)       # cnn1.weight
    b1 = u(ks[1], (16,), 25)               # cnn1.bias
    w2 = u(ks[2], (32, 16, 5, 5), 400)     # cnn2.weight
    b2 = u(ks[3], (32,), 400)              # cnn2.bias
    wfc = u(ks[4], (10, 512), 512)         # fc1.weight
    bfc = u(ks[5], (10,), 512)             # fc1.bias
    return w1, b1, w2, b2, wfc, bfc


def cnn_forward(x, params, blk_b=DEFAULT_BLK_B):
    w1, b1, w2, b2, wfc, bfc = params
    B = x.shape[0]
    blk_b = min(blk_b, B)
    Bp = _round_up(B, blk_b)
    if Bp != B:
        x = jnp.pad(x, ((0, Bp - B), (0, 0), (0, 0), (0, 0)))

    # conv1 + relu + maxpool1 (Pallas, one GEMM per batch block)
    p1 = conv1_patches(x)                                           # (Bp, 4, 144, 32)
    w1_mat = jnp.pad(w1.reshape(C1, K1), ((0, 0), (0, K1P - K1))).T  # (32, 16)
    h1 = conv1_relu_pool(p1, w1_mat, b1.reshape(1, C1), blk_b)      # (Bp, 144, 16)

    # conv2 + relu + maxpool2 + fc1 (Pallas, conv GEMM + fused FC)
    p2 = conv2_patches(h1)                                          # (Bp, 4, 16, 400)
    w2_mat = w2.reshape(C2, K2).T                                   # (400, 32)
    # Fold the PyTorch NCHW flatten (index c*16 + p) into the FC weight: wfc'[p, c, o],
    # lane-padded 10 -> 128 so the kernel's output stores are full-width.
    wfc_t = jnp.transpose(wfc.reshape(N_OUT, C2, P2), (2, 1, 0))    # (16, 32, 10)
    wfc_pad = jnp.pad(wfc_t, ((0, 0), (0, 0), (0, NF_PAD - N_OUT)))  # (16, 32, 128)
    bfc_pad = jnp.pad(bfc.reshape(1, N_OUT), ((0, 0), (0, NF_PAD - N_OUT)))
    out = conv2_pool_fc(p2, w2_mat, b2.reshape(1, C2), wfc_pad, bfc_pad, blk_b)  # (Bp, 128)

    return out[:B, :N_OUT]


def ref_forward(x, params):
    """Pure-JAX reference mirroring the PyTorch forward exactly."""
    w1, b1, w2, b2, wfc, bfc = params
    dn = ('NCHW', 'OIHW', 'NCHW')
    y = lax.conv_general_dilated(x, w1, (1, 1), 'VALID', dimension_numbers=dn)
    y = jnp.maximum(y + b1[None, :, None, None], 0.0)
    y = lax.reduce_window(y, -jnp.inf, lax.max, (1, 1, 2, 2), (1, 1, 2, 2), 'VALID')
    y = lax.conv_general_dilated(y, w2, (1, 1), 'VALID', dimension_numbers=dn)
    y = jnp.maximum(y + b2[None, :, None, None], 0.0)
    y = lax.reduce_window(y, -jnp.inf, lax.max, (1, 1, 2, 2), (1, 1, 2, 2), 'VALID')
    y = y.reshape(y.shape[0], -1)
    return y @ wfc.T + bfc


if __name__ == "__main__":
    # MNIST geometry is fixed by fc1 (32*4*4) -> 28x28 input, 1 channel; batch=2.
    k_x, k_p = jax.random.split(jax.random.PRNGKey(0))
    x = jax.random.normal(k_x, (2, 1, 28, 28), jnp.float32)
    params = init_params(k_p)

    fwd = jax.jit(cnn_forward)
    out = jax.block_until_ready(fwd(x, params))
    assert out.shape == (2, 10), out.shape

    ref = ref_forward(x, params)
    np.testing.assert_allclose(np.asarray(out), np.asarray(ref), rtol=1e-4, atol=1e-4)

    print("KERNEL_OK")
</pallas_src>

<mosaic_0001>
module attributes {stable_mosaic.version = 11 : i64} {
  func.func @_conv1_kernel(%arg0: i32, %arg1: memref<2x4x144x32xf32, #tpu.memory_space<vmem>>, %arg2: memref<32x16xf32, #tpu.memory_space<vmem>>, %arg3: memref<1x16xf32, #tpu.memory_space<vmem>>, %arg4: memref<2x144x16xf32, #tpu.memory_space<vmem>>) attributes {dimension_semantics = [#tpu.dimension_semantics<parallel>], iteration_bounds = array<i64: 1>, scalar_prefetch = 0 : i64, scratch_operands = 0 : i64, tpu.core_type = #tpu.core_type<tc>, window_params = [{transform_indices = @transform_0, window_bounds = array<i64: 2, 4, 144, 32>}, {pipeline_mode = #tpu.pipeline_mode<synchronous>, transform_indices = @transform_1, window_bounds = array<i64: 32, 16>}, {pipeline_mode = #tpu.pipeline_mode<synchronous>, transform_indices = @transform_2, window_bounds = array<i64: 1, 16>}, {transform_indices = @transform_3, window_bounds = array<i64: 2, 144, 16>}]} {
    %c0 = arith.constant 0 : index
    %c0_0 = arith.constant 0 : index
    %c0_1 = arith.constant 0 : index
    %c0_2 = arith.constant 0 : index
    %0 = vector.load %arg1[%c0, %c0_0, %c0_1, %c0_2] : memref<2x4x144x32xf32, #tpu.memory_space<vmem>>, vector<2x4x144x32xf32>
    %1 = vector.shape_cast %0 : vector<2x4x144x32xf32> to vector<1152x32xf32>
    %c0_3 = arith.constant 0 : index
    %c0_4 = arith.constant 0 : index
    %2 = vector.load %arg2[%c0_3, %c0_4] : memref<32x16xf32, #tpu.memory_space<vmem>>, vector<32x16xf32>
    %cst = arith.constant dense<0.000000e+00> : vector<1152x16xf32>
    %3 = tpu.matmul %1, %2, %cst {dimension_numbers = #tpu.dot_dimension_numbers<[1], [0], [0], [1], [0, 0, 1, 1], [], []>} : vector<1152x32xf32>, vector<32x16xf32>, vector<1152x16xf32> -> vector<1152x16xf32>
    %4 = vector.shape_cast %3 : vector<1152x16xf32> to vector<2x4x144x16xf32>
    %5 = vector.extract_strided_slice %4 {offsets = [0, 0, 0, 0], sizes = [2, 1, 144, 16], strides = [1, 1, 1, 1]} : vector<2x4x144x16xf32> to vector<2x1x144x16xf32>
    %6 = vector.shape_cast %5 : vector<2x1x144x16xf32> to vector<2x144x16xf32>
    %7 = vector.extract_strided_slice %4 {offsets = [0, 1, 0, 0], sizes = [2, 1, 144, 16], strides = [1, 1, 1, 1]} : vector<2x4x144x16xf32> to vector<2x1x144x16xf32>
    %8 = vector.shape_cast %7 : vector<2x1x144x16xf32> to vector<2x144x16xf32>
    %9 = arith.maximumf %6, %8 : vector<2x144x16xf32>
    %10 = vector.extract_strided_slice %4 {offsets = [0, 2, 0, 0], sizes = [2, 1, 144, 16], strides = [1, 1, 1, 1]} : vector<2x4x144x16xf32> to vector<2x1x144x16xf32>
    %11 = vector.shape_cast %10 : vector<2x1x144x16xf32> to vector<2x144x16xf32>
    %12 = vector.extract_strided_slice %4 {offsets = [0, 3, 0, 0], sizes = [2, 1, 144, 16], strides = [1, 1, 1, 1]} : vector<2x4x144x16xf32> to vector<2x1x144x16xf32>
    %13 = vector.shape_cast %12 : vector<2x1x144x16xf32> to vector<2x144x16xf32>
    %14 = arith.maximumf %11, %13 : vector<2x144x16xf32>
    %15 = arith.maximumf %9, %14 : vector<2x144x16xf32>
    %c0_5 = arith.constant 0 : index
    %c0_6 = arith.constant 0 : index
    %16 = vector.load %arg3[%c0_5, %c0_6] : memref<1x16xf32, #tpu.memory_space<vmem>>, vector<1x16xf32>
    %17 = vector.shape_cast %16 : vector<1x16xf32> to vector<1x1x16xf32>
    %18 = vector.broadcast %17 : vector<1x1x16xf32> to vector<2x144x16xf32>
    %19 = arith.addf %15, %18 : vector<2x144x16xf32>
    %cst_7 = arith.constant 0.000000e+00 : f32
    %20 = vector.broadcast %cst_7 : f32 to vector<2x144x16xf32>
    %21 = arith.maximumf %19, %20 : vector<2x144x16xf32>
    %c0_8 = arith.constant 0 : index
    %c0_9 = arith.constant 0 : index
    %c0_10 = arith.constant 0 : index
    %22 = vector.load %arg4[%c0_8, %c0_9, %c0_10] : memref<2x144x16xf32, #tpu.memory_space<vmem>>, vector<2x144x16xf32>
    tpu.vector_store %arg4[%c0_8, %c0_9, %c0_10], %21 {strides = array<i32>} : memref<2x144x16xf32, #tpu.memory_space<vmem>>, vector<2x144x16xf32>,
    return
  }
  func.func @transform_0(%arg0: i32) -> (i32, i32, i32, i32) {
    %c0_i32 = arith.constant 0 : i32
    %c0_i32_0 = arith.constant 0 : i32
    %c0_i32_1 = arith.constant 0 : i32
    %c0_i32_2 = arith.constant 0 : i32
    return %arg0, %c0_i32, %c0_i32_0, %c0_i32_1 : i32, i32, i32, i32
  }
  func.func @transform_1(%arg0: i32) -> (i32, i32) {
    %c0_i32 = arith.constant 0 : i32
    %c0_i32_0 = arith.constant 0 : i32
    %c0_i32_1 = arith.constant 0 : i32
    return %c0_i32, %c0_i32_0 : i32, i32
  }
  func.func @transform_2(%arg0: i32) -> (i32, i32) {
    %c0_i32 = arith.constant 0 : i32
    %c0_i32_0 = arith.constant 0 : i32
    %c0_i32_1 = arith.constant 0 : i32
    return %c0_i32, %c0_i32_0 : i32, i32
  }
  func.func @transform_3(%arg0: i32) -> (i32, i32, i32) {
    %c0_i32 = arith.constant 0 : i32
    %c0_i32_0 = arith.constant 0 : i32
    %c0_i32_1 = arith.constant 0 : i32
    return %arg0, %c0_i32, %c0_i32_0 : i32, i32, i32
  }
}

module attributes {stable_mosaic.version = 11 : i64} {
  func.func @_conv2_fc_kernel(%arg0: i32, %arg1: memref<2x4x16x400xf32, #tpu.memory_space<vmem>>, %arg2: memref<400x32xf32, #tpu.memory_space<vmem>>, %arg3: memref<1x32xf32, #tpu.memory_space<vmem>>, %arg4: memref<16x32x128xf32, #tpu.memory_space<vmem>>, %arg5: memref<1x128xf32, #tpu.memory_space<vmem>>, %arg6: memref<2x128xf32, #tpu.memory_space<vmem>>) attributes {dimension_semantics = [#tpu.dimension_semantics<parallel>], iteration_bounds = array<i64: 1>, scalar_prefetch = 0 : i64, scratch_operands = 0 : i64, tpu.core_type = #tpu.core_type<tc>, window_params = [{transform_indices = @transform_0, window_bounds = array<i64: 2, 4, 16, 400>}, {pipeline_mode = #tpu.pipeline_mode<synchronous>, transform_indices = @transform_1, window_bounds = array<i64: 400, 32>}, {pipeline_mode = #tpu.pipeline_mode<synchronous>, transform_indices = @transform_2, window_bounds = array<i64: 1, 32>}, {pipeline_mode = #tpu.pipeline_mode<synchronous>, transform_indices = @transform_3, window_bounds = array<i64: 16, 32, 128>}, {pipeline_mode = #tpu.pipeline_mode<synchronous>, transform_indices = @transform_4, window_bounds = array<i64: 1, 128>}, {transform_indices = @transform_5, window_bounds = array<i64: 2, 128>}]} {
    %c0 = arith.constant 0 : index
    %c0_0 = arith.constant 0 : index
    %c0_1 = arith.constant 0 : index
    %c0_2 = arith.constant 0 : index
    %0 = vector.load %arg1[%c0, %c0_0, %c0_1, %c0_2] : memref<2x4x16x400xf32, #tpu.memory_space<vmem>>, vector<2x4x16x400xf32>
    %1 = vector.shape_cast %0 : vector<2x4x16x400xf32> to vector<128x400xf32>
    %c0_3 = arith.constant 0 : index
    %c0_4 = arith.constant 0 : index
    %2 = vector.load %arg2[%c0_3, %c0_4] : memref<400x32xf32, #tpu.memory_space<vmem>>, vector<400x32xf32>
    %cst = arith.constant dense<0.000000e+00> : vector<128x32xf32>
    %3 = tpu.matmul %1, %2, %cst {dimension_numbers = #tpu.dot_dimension_numbers<[1], [0], [0], [1], [0, 0, 1, 1], [], []>} : vector<128x400xf32>, vector<400x32xf32>, vector<128x32xf32> -> vector<128x32xf32>
    %4 = vector.shape_cast %3 : vector<128x32xf32> to vector<2x4x16x32xf32>
    %5 = vector.extract_strided_slice %4 {offsets = [0, 0, 0, 0], sizes = [2, 1, 16, 32], strides = [1, 1, 1, 1]} : vector<2x4x16x32xf32> to vector<2x1x16x32xf32>
    %6 = vector.shape_cast %5 : vector<2x1x16x32xf32> to vector<2x16x32xf32>
    %7 = vector.extract_strided_slice %4 {offsets = [0, 1, 0, 0], sizes = [2, 1, 16, 32], strides = [1, 1, 1, 1]} : vector<2x4x16x32xf32> to vector<2x1x16x32xf32>
    %8 = vector.shape_cast %7 : vector<2x1x16x32xf32> to vector<2x16x32xf32>
    %9 = arith.maximumf %6, %8 : vector<2x16x32xf32>
    %10 = vector.extract_strided_slice %4 {offsets = [0, 2, 0, 0], sizes = [2, 1, 16, 32], strides = [1, 1, 1, 1]} : vector<2x4x16x32xf32> to vector<2x1x16x32xf32>
    %11 = vector.shape_cast %10 : vector<2x1x16x32xf32> to vector<2x16x32xf32>
    %12 = vector.extract_strided_slice %4 {offsets = [0, 3, 0, 0], sizes = [2, 1, 16, 32], strides = [1, 1, 1, 1]} : vector<2x4x16x32xf32> to vector<2x1x16x32xf32>
    %13 = vector.shape_cast %12 : vector<2x1x16x32xf32> to vector<2x16x32xf32>
    %14 = arith.maximumf %11, %13 : vector<2x16x32xf32>
    %15 = arith.maximumf %9, %14 : vector<2x16x32xf32>
    %c0_5 = arith.constant 0 : index
    %c0_6 = arith.constant 0 : index
    %16 = vector.load %arg3[%c0_5, %c0_6] : memref<1x32xf32, #tpu.memory_space<vmem>>, vector<1x32xf32>
    %17 = vector.shape_cast %16 : vector<1x32xf32> to vector<1x1x32xf32>
    %18 = vector.broadcast %17 : vector<1x1x32xf32> to vector<2x16x32xf32>
    %19 = arith.addf %15, %18 : vector<2x16x32xf32>
    %cst_7 = arith.constant 0.000000e+00 : f32
    %20 = vector.broadcast %cst_7 : f32 to vector<2x16x32xf32>
    %21 = arith.maximumf %19, %20 : vector<2x16x32xf32>
    %c0_8 = arith.constant 0 : index
    %c0_9 = arith.constant 0 : index
    %c0_10 = arith.constant 0 : index
    %22 = vector.load %arg4[%c0_8, %c0_9, %c0_10] : memref<16x32x128xf32, #tpu.memory_space<vmem>>, vector<16x32x128xf32>
    %cst_11 = arith.constant 0.000000e+00 : f32
    %23 = vector.broadcast %cst_11 : f32 to vector<2x128xf32>
    %24 = vector.extract_strided_slice %21 {offsets = [0, 0, 0], sizes = [2, 1, 32], strides = [1, 1, 1]} : vector<2x16x32xf32> to vector<2x1x32xf32>
    %25 = vector.shape_cast %24 : vector<2x1x32xf32> to vector<2x32xf32>
    %26 = vector.extract_strided_slice %22 {offsets = [0, 0, 0], sizes = [1, 32, 128], strides = [1, 1, 1]} : vector<16x32x128xf32> to vector<1x32x128xf32>
    %27 = vector.shape_cast %26 : vector<1x32x128xf32> to vector<32x128xf32>
    %cst_12 = arith.constant dense<0.000000e+00> : vector<2x128xf32>
    %28 = tpu.matmul %25, %27, %cst_12 {dimension_numbers = #tpu.dot_dimension_numbers<[1], [0], [0], [1], [0, 0, 1, 1], [], []>} : vector<2x32xf32>, vector<32x128xf32>, vector<2x128xf32> -> vector<2x128xf32>
    %29 = arith.addf %23, %28 : vector<2x128xf32>
    %30 = vector.extract_strided_slice %21 {offsets = [0, 1, 0], sizes = [2, 1, 32], strides = [1, 1, 1]} : vector<2x16x32xf32> to vector<2x1x32xf32>
    %31 = vector.shape_cast %30 : vector<2x1x32xf32> to vector<2x32xf32>
    %32 = vector.extract_strided_slice %22 {offsets = [1, 0, 0], sizes = [1, 32, 128], strides = [1, 1, 1]} : vector<16x32x128xf32> to vector<1x32x128xf32>
    %33 = vector.shape_cast %32 : vector<1x32x128xf32> to vector<32x128xf32>
    %cst_13 = arith.constant dense<0.000000e+00> : vector<2x128xf32>
    %34 = tpu.matmul %31, %33, %cst_13 {dimension_numbers = #tpu.dot_dimension_numbers<[1], [0], [0], [1], [0, 0, 1, 1], [], []>} : vector<2x32xf32>, vector<32x128xf32>, vector<2x128xf32> -> vector<2x128xf32>
    %35 = arith.addf %29, %34 : vector<2x128xf32>
    %36 = vector.extract_strided_slice %21 {offsets = [0, 2, 0], sizes = [2, 1, 32], strides = [1, 1, 1]} : vector<2x16x32xf32> to vector<2x1x32xf32>
    %37 = vector.shape_cast %36 : vector<2x1x32xf32> to vector<2x32xf32>
    %38 = vector.extract_strided_slice %22 {offsets = [2, 0, 0], sizes = [1, 32, 128], strides = [1, 1, 1]} : vector<16x32x128xf32> to vector<1x32x128xf32>
    %39 = vector.shape_cast %38 : vector<1x32x128xf32> to vector<32x128xf32>
    %cst_14 = arith.constant dense<0.000000e+00> : vector<2x128xf32>
    %40 = tpu.matmul %37, %39, %cst_14 {dimension_numbers = #tpu.dot_dimension_numbers<[1], [0], [0], [1], [0, 0, 1, 1], [], []>} : vector<2x32xf32>, vector<32x128xf32>, vector<2x128xf32> -> vector<2x128xf32>
    %41 = arith.addf %35, %40 : vector<2x128xf32>
    %42 = vector.extract_strided_slice %21 {offsets = [0, 3, 0], sizes = [2, 1, 32], strides = [1, 1, 1]} : vector<2x16x32xf32> to vector<2x1x32xf32>
    %43 = vector.shape_cast %42 : vector<2x1x32xf32> to vector<2x32xf32>
    %44 = vector.extract_strided_slice %22 {offsets = [3, 0, 0], sizes = [1, 32, 128], strides = [1, 1, 1]} : vector<16x32x128xf32> to vector<1x32x128xf32>
    %45 = vector.shape_cast %44 : vector<1x32x128xf32> to vector<32x128xf32>
    %cst_15 = arith.constant dense<0.000000e+00> : vector<2x128xf32>
    %46 = tpu.matmul %43, %45, %cst_15 {dimension_numbers = #tpu.dot_dimension_numbers<[1], [0], [0], [1], [0, 0, 1, 1], [], []>} : vector<2x32xf32>, vector<32x128xf32>, vector<2x128xf32> -> vector<2x128xf32>
    %47 = arith.addf %41, %46 : vector<2x128xf32>
    %48 = vector.extract_strided_slice %21 {offsets = [0, 4, 0], sizes = [2, 1, 32], strides = [1, 1, 1]} : vector<2x16x32xf32> to vector<2x1x32xf32>
    %49 = vector.shape_cast %48 : vector<2x1x32xf32> to vector<2x32xf32>
    %50 = vector.extract_strided_slice %22 {offsets = [4, 0, 0], sizes = [1, 32, 128], strides = [1, 1, 1]} : vector<16x32x128xf32> to vector<1x32x128xf32>
    %51 = vector.shape_cast %50 : vector<1x32x128xf32> to vector<32x128xf32>
    %cst_16 = arith.constant dense<0.000000e+00> : vector<2x128xf32>
    %52 = tpu.matmul %49, %51, %cst_16 {dimension_numbers = #tpu.dot_dimension_numbers<[1], [0], [0], [1], [0, 0, 1, 1], [], []>} : vector<2x32xf32>, vector<32x128xf32>, vector<2x128xf32> -> vector<2x128xf32>
    %53 = arith.addf %47, %52 : vector<2x128xf32>
    %54 = vector.extract_strided_slice %21 {offsets = [0, 5, 0], sizes = [2, 1, 32], strides = [1, 1, 1]} : vector<2x16x32xf32> to vector<2x1x32xf32>
    %55 = vector.shape_cast %54 : vector<2x1x32xf32> to vector<2x32xf32>
    %56 = vector.extract_strided_slice %22 {offsets = [5, 0, 0], sizes = [1, 32, 128], strides = [1, 1, 1]} : vector<16x32x128xf32> to vector<1x32x128xf32>
    %57 = vector.shape_cast %56 : vector<1x32x128xf32> to vector<32x128xf32>
    %cst_17 = arith.constant dense<0.000000e+00> : vector<2x128xf32>
    %58 = tpu.matmul %55, %57, %cst_17 {dimension_numbers = #tpu.dot_dimension_numbers<[1], [0], [0], [1], [0, 0, 1, 1], [], []>} : vector<2x32xf32>, vector<32x128xf32>, vector<2x128xf32> -> vector<2x128xf32>
    %59 = arith.addf %53, %58 : vector<2x128xf32>
    %60 = vector.extract_strided_slice %21 {offsets = [0, 6, 0], sizes = [2, 1, 32], strides = [1, 1, 1]} : vector<2x16x32xf32> to vector<2x1x32xf32>
    %61 = vector.shape_cast %60 : vector<2x1x32xf32> to vector<2x32xf32>
    %62 = vector.extract_strided_slice %22 {offsets = [6, 0, 0], sizes = [1, 32, 128], strides = [1, 1, 1]} : vector<16x32x128xf32> to vector<1x32x128xf32>
    %63 = vector.shape_cast %62 : vector<1x32x128xf32> to vector<32x128xf32>
    %cst_18 = arith.constant dense<0.000000e+00> : vector<2x128xf32>
    %64 = tpu.matmul %61, %63, %cst_18 {dimension_numbers = #tpu.dot_dimension_numbers<[1], [0], [0], [1], [0, 0, 1, 1], [], []>} : vector<2x32xf32>, vector<32x128xf32>, vector<2x128xf32> -> vector<2x128xf32>
    %65 = arith.addf %59, %64 : vector<2x128xf32>
    %66 = vector.extract_strided_slice %21 {offsets = [0, 7, 0], sizes = [2, 1, 32], strides = [1, 1, 1]} : vector<2x16x32xf32> to vector<2x1x32xf32>
    %67 = vector.shape_cast %66 : vector<2x1x32xf32> to vector<2x32xf32>
    %68 = vector.extract_strided_slice %22 {offsets = [7, 0, 0], sizes = [1, 32, 128], strides = [1, 1, 1]} : vector<16x32x128xf32> to vector<1x32x128xf32>
    %69 = vector.shape_cast %68 : vector<1x32x128xf32> to vector<32x128xf32>
    %cst_19 = arith.constant dense<0.000000e+00> : vector<2x128xf32>
    %70 = tpu.matmul %67, %69, %cst_19 {dimension_numbers = #tpu.dot_dimension_numbers<[1], [0], [0], [1], [0, 0, 1, 1], [], []>} : vector<2x32xf32>, vector<32x128xf32>, vector<2x128xf32> -> vector<2x128xf32>
    %71 = arith.addf %65, %70 : vector<2x128xf32>
    %72 = vector.extract_strided_slice %21 {offsets = [0, 8, 0], sizes = [2, 1, 32], strides = [1, 1, 1]} : vector<2x16x32xf32> to vector<2x1x32xf32>
    %73 = vector.shape_cast %72 : vector<2x1x32xf32> to vector<2x32xf32>
    %74 = vector.extract_strided_slice %22 {offsets = [8, 0, 0], sizes = [1, 32, 128], strides = [1, 1, 1]} : vector<16x32x128xf32> to vector<1x32x128xf32>
    %75 = vector.shape_cast %74 : vector<1x32x128xf32> to vector<32x128xf32>
    %cst_20 = arith.constant dense<0.000000e+00> : vector<2x128xf32>
    %76 = tpu.matmul %73, %75, %cst_20 {dimension_numbers = #tpu.dot_dimension_numbers<[1], [0], [0], [1], [0, 0, 1, 1], [], []>} : vector<2x32xf32>, vector<32x128xf32>, vector<2x128xf32> -> vector<2x128xf32>
    %77 = arith.addf %71, %76 : vector<2x128xf32>
    %78 = vector.extract_strided_slice %21 {offsets = [0, 9, 0], sizes = [2, 1, 32], strides = [1, 1, 1]} : vector<2x16x32xf32> to vector<2x1x32xf32>
    %79 = vector.shape_cast %78 : vector<2x1x32xf32> to vector<2x32xf32>
    %80 = vector.extract_strided_slice %22 {offsets = [9, 0, 0], sizes = [1, 32, 128], strides = [1, 1, 1]} : vector<16x32x128xf32> to vector<1x32x128xf32>
    %81 = vector.shape_cast %80 : vector<1x32x128xf32> to vector<32x128xf32>
    %cst_21 = arith.constant dense<0.000000e+00> : vector<2x128xf32>
    %82 = tpu.matmul %79, %81, %cst_21 {dimension_numbers = #tpu.dot_dimension_numbers<[1], [0], [0], [1], [0, 0, 1, 1], [], []>} : vector<2x32xf32>, vector<32x128xf32>, vector<2x128xf32> -> vector<2x128xf32>
    %83 = arith.addf %77, %82 : vector<2x128xf32>
    %84 = vector.extract_strided_slice %21 {offsets = [0, 10, 0], sizes = [2, 1, 32], strides = [1, 1, 1]} : vector<2x16x32xf32> to vector<2x1x32xf32>
    %85 = vector.shape_cast %84 : vector<2x1x32xf32> to vector<2x32xf32>
    %86 = vector.extract_strided_slice %22 {offsets = [10, 0, 0], sizes = [1, 32, 128], strides = [1, 1, 1]} : vector<16x32x128xf32> to vector<1x32x128xf32>
    %87 = vector.shape_cast %86 : vector<1x32x128xf32> to vector<32x128xf32>
    %cst_22 = arith.constant dense<0.000000e+00> : vector<2x128xf32>
    %88 = tpu.matmul %85, %87, %cst_22 {dimension_numbers = #tpu.dot_dimension_numbers<[1], [0], [0], [1], [0, 0, 1, 1], [], []>} : vector<2x32xf32>, vector<32x128xf32>, vector<2x128xf32> -> vector<2x128xf32>
    %89 = arith.addf %83, %88 : vector<2x128xf32>
    %90 = vector.extract_strided_slice %21 {offsets = [0, 11, 0], sizes = [2, 1, 32], strides = [1, 1, 1]} : vector<2x16x32xf32> to vector<2x1x32xf32>
    %91 = vector.shape_cast %90 : vector<2x1x32xf32> to vector<2x32xf32>
    %92 = vector.extract_strided_slice %22 {offsets = [11, 0, 0], sizes = [1, 32, 128], strides = [1, 1, 1]} : vector<16x32x128xf32> to vector<1x32x128xf32>
    %93 = vector.shape_cast %92 : vector<1x32x128xf32> to vector<32x128xf32>
    %cst_23 = arith.constant dense<0.000000e+00> : vector<2x128xf32>
    %94 = tpu.matmul %91, %93, %cst_23 {dimension_numbers = #tpu.dot_dimension_numbers<[1], [0], [0], [1], [0, 0, 1, 1], [], []>} : vector<2x32xf32>, vector<32x128xf32>, vector<2x128xf32> -> vector<2x128xf32>
    %95 = arith.addf %89, %94 : vector<2x128xf32>
    %96 = vector.extract_strided_slice %21 {offsets = [0, 12, 0], sizes = [2, 1, 32], strides = [1, 1, 1]} : vector<2x16x32xf32> to vector<2x1x32xf32>
    %97 = vector.shape_cast %96 : vector<2x1x32xf32> to vector<2x32xf32>
    %98 = vector.extract_strided_slice %22 {offsets = [12, 0, 0], sizes = [1, 32, 128], strides = [1, 1, 1]} : vector<16x32x128xf32> to vector<1x32x128xf32>
    %99 = vector.shape_cast %98 : vector<1x32x128xf32> to vector<32x128xf32>
    %cst_24 = arith.constant dense<0.000000e+00> : vector<2x128xf32>
    %100 = tpu.matmul %97, %99, %cst_24 {dimension_numbers = #tpu.dot_dimension_numbers<[1], [0], [0], [1], [0, 0, 1, 1], [], []>} : vector<2x32xf32>, vector<32x128xf32>, vector<2x128xf32> -> vector<2x128xf32>
    %101 = arith.addf %95, %100 : vector<2x128xf32>
    %102 = vector.extract_strided_slice %21 {offsets = [0, 13, 0], sizes = [2, 1, 32], strides = [1, 1, 1]} : vector<2x16x32xf32> to vector<2x1x32xf32>
    %103 = vector.shape_cast %102 : vector<2x1x32xf32> to vector<2x32xf32>
    %104 = vector.extract_strided_slice %22 {offsets = [13, 0, 0], sizes = [1, 32, 128], strides = [1, 1, 1]} : vector<16x32x128xf32> to vector<1x32x128xf32>
    %105 = vector.shape_cast %104 : vector<1x32x128xf32> to vector<32x128xf32>
    %cst_25 = arith.constant dense<0.000000e+00> : vector<2x128xf32>
    %106 = tpu.matmul %103, %105, %cst_25 {dimension_numbers = #tpu.dot_dimension_numbers<[1], [0], [0], [1], [0, 0, 1, 1], [], []>} : vector<2x32xf32>, vector<32x128xf32>, vector<2x128xf32> -> vector<2x128xf32>
    %107 = arith.addf %101, %106 : vector<2x128xf32>
    %108 = vector.extract_strided_slice %21 {offsets = [0, 14, 0], sizes = [2, 1, 32], strides = [1, 1, 1]} : vector<2x16x32xf32> to vector<2x1x32xf32>
    %109 = vector.shape_cast %108 : vector<2x1x32xf32> to vector<2x32xf32>
    %110 = vector.extract_strided_slice %22 {offsets = [14, 0, 0], sizes = [1, 32, 128], strides = [1, 1, 1]} : vector<16x32x128xf32> to vector<1x32x128xf32>
    %111 = vector.shape_cast %110 : vector<1x32x128xf32> to vector<32x128xf32>
    %cst_26 = arith.constant dense<0.000000e+00> : vector<2x128xf32>
    %112 = tpu.matmul %109, %111, %cst_26 {dimension_numbers = #tpu.dot_dimension_numbers<[1], [0], [0], [1], [0, 0, 1, 1], [], []>} : vector<2x32xf32>, vector<32x128xf32>, vector<2x128xf32> -> vector<2x128xf32>
    %113 = arith.addf %107, %112 : vector<2x128xf32>
    %114 = vector.extract_strided_slice %21 {offsets = [0, 15, 0], sizes = [2, 1, 32], strides = [1, 1, 1]} : vector<2x16x32xf32> to vector<2x1x32xf32>
    %115 = vector.shape_cast %114 : vector<2x1x32xf32> to vector<2x32xf32>
    %116 = vector.extract_strided_slice %22 {offsets = [15, 0, 0], sizes = [1, 32, 128], strides = [1, 1, 1]} : vector<16x32x128xf32> to vector<1x32x128xf32>
    %117 = vector.shape_cast %116 : vector<1x32x128xf32> to vector<32x128xf32>
    %cst_27 = arith.constant dense<0.000000e+00> : vector<2x128xf32>
    %118 = tpu.matmul %115, %117, %cst_27 {dimension_numbers = #tpu.dot_dimension_numbers<[1], [0], [0], [1], [0, 0, 1, 1], [], []>} : vector<2x32xf32>, vector<32x128xf32>, vector<2x128xf32> -> vector<2x128xf32>
    %119 = arith.addf %113, %118 : vector<2x128xf32>
    %c0_28 = arith.constant 0 : index
    %c0_29 = arith.constant 0 : index
    %120 = vector.load %arg5[%c0_28, %c0_29] : memref<1x128xf32, #tpu.memory_space<vmem>>, vector<1x128xf32>
    %121 = vector.broadcast %120 : vector<1x128xf32> to vector<2x128xf32>
    %122 = arith.addf %119, %121 : vector<2x128xf32>
    %c0_30 = arith.constant 0 : index
    %c0_31 = arith.constant 0 : index
    %123 = vector.load %arg6[%c0_30, %c0_31] : memref<2x128xf32, #tpu.memory_space<vmem>>, vector<2x128xf32>
    tpu.vector_store %arg6[%c0_30, %c0_31], %122 {strides = array<i32>} : memref<2x128xf32, #tpu.memory_space<vmem>>, vector<2x128xf32>,
    return
  }
  func.func @transform_0(%arg0: i32) -> (i32, i32, i32, i32) {
    %c0_i32 = arith.constant 0 : i32
    %c0_i32_0 = arith.constant 0 : i32
    %c0_i32_1 = arith.constant 0 : i32
    %c0_i32_2 = arith.constant 0 : i32
    return %arg0, %c0_i32, %c0_i32_0, %c0_i32_1 : i32, i32, i32, i32
  }
  func.func @transform_1(%arg0: i32) -> (i32, i32) {
    %c0_i32 = arith.constant 0 : i32
    %c0_i32_0 = arith.constant 0 : i32
    %c0_i32_1 = arith.constant 0 : i32
    return %c0_i32, %c0_i32_0 : i32, i32
  }
  func.func @transform_2(%arg0: i32) -> (i32, i32) {
    %c0_i32 = arith.constant 0 : i32
    %c0_i32_0 = arith.constant 0 : i32
    %c0_i32_1 = arith.constant 0 : i32
    return %c0_i32, %c0_i32_0 : i32, i32
  }
  func.func @transform_3(%arg0: i32) -> (i32, i32, i32) {
    %c0_i32 = arith.constant 0 : i32
    %c0_i32_0 = arith.constant 0 : i32
    %c0_i32_1 = arith.constant 0 : i32
    %c0_i32_2 = arith.constant 0 : i32
    return %c0_i32, %c0_i32_0, %c0_i32_1 : i32, i32, i32
  }
  func.func @transform_4(%arg0: i32) -> (i32, i32) {
    %c0_i32 = arith.constant 0 : i32
    %c0_i32_0 = arith.constant 0 : i32
    %c0_i32_1 = arith.constant 0 : i32
    return %c0_i32, %c0_i32_0 : i32, i32
  }
  func.func @transform_5(%arg0: i32) -> (i32, i32) {
    %c0_i32 = arith.constant 0 : i32
    %c0_i32_0 = arith.constant 0 : i32
    return %arg0, %c0_i32 : i32, i32
  }
}

</mosaic_0001>

<llo_original>
// kernel: cnn_forward.2
$region0: #{cnn_forward.2}
  #allocation0 [shape = 'u32[]', space=smem, size = 0x4, offset = 0x4, fixed_abs, tag = 'smem constant byte address 0x4 - core index']
  #allocation1 [shape = 'u32[72,128]{1,0:T(1,128)}', space=vmem, size = 0x9000, scoped, tag = 'internal scratch']
  %s0 = inlined_call_operand.vmem [shape: f32[2,4,144,32], index: 0, kind: input, shape index: {}]
  %s1 = inlined_call_operand.vmem [shape: f32[32,16], index: 1, kind: input, shape index: {}]
  %s2 = inlined_call_operand.vmem [shape: f32[1,16], index: 2, kind: input, shape index: {}]
  %s3 = inlined_call_operand.vmem [shape: f32[2,144,16], index: 3, kind: output, shape index: {}]
  %s4 = sld [smem:[#allocation0]]
  $region22: #{cnn_forward.2} parent=0
    _
  %s6 = ssub.s32 1, %s4
  %s7 = scalar_select 0, %s6, %s4
  // Predicated region
  $region2: #{cnn_forward.2} parent=0 // pred_check
    _
  $region3: #{cnn_forward.2} parent=0 // pred_check_branch
    %9 = sbr.rel (0) target = $region5
  $region4: #{cnn_forward.2} parent=0 // pred_region
    _
  $region5: #{cnn_forward.2} parent=0 // pred_fallthru
    _
  // Predicated region
  $region6: #{cnn_forward.2} parent=0 // pred_check
    _
  $region7: #{cnn_forward.2} parent=0 // pred_check_branch
    %11 = sbr.rel (0) target = $region9
  $region8: #{cnn_forward.2} parent=0 // pred_region
    _
  $region9: #{cnn_forward.2} parent=0 // pred_fallthru
    _
  // Predicated region
  $region10: #{cnn_forward.2} parent=0 // pred_check
    _
  $region11: #{cnn_forward.2} parent=0 // pred_check_branch
    %13 = sbr.rel (0) target = $region13
  $region12: #{cnn_forward.2} parent=0 // pred_region
    _
  $region13: #{cnn_forward.2} parent=0 // pred_fallthru
    _
  %v14 = vld [vmem:[%s0] sm:$0xff]
  %v15 = vld [vmem:[%s0 + $0x8] sm:$0xff]
  %v16 = vld [vmem:[%s0 + $0x10] sm:$0xff]
  %v17 = vld [vmem:[%s0 + $0x18] sm:$0xff]
  %v18 = vld [vmem:[%s0 + $0x20] sm:$0xff]
  %v19 = vld [vmem:[%s0 + $0x28] sm:$0xff]
  %v20 = vld [vmem:[%s0 + $0x30] sm:$0xff]
  %v21 = vld [vmem:[%s0 + $0x38] sm:$0xff]
  %v22 = vld [vmem:[%s0 + $0x40] sm:$0xff]
  %v23 = vld [vmem:[%s0 + $0x48] sm:$0xff]
  %v24 = vld [vmem:[%s0 + $0x50] sm:$0xff]
  %v25 = vld [vmem:[%s0 + $0x58] sm:$0xff]
  %v26 = vld [vmem:[%s0 + $0x60] sm:$0xff]
  %v27 = vld [vmem:[%s0 + $0x68] sm:$0xff]
  %v28 = vld [vmem:[%s0 + $0x70] sm:$0xff]
  %v29 = vld [vmem:[%s0 + $0x78] sm:$0xff]
  %v30 = vld [vmem:[%s0 + $0x80] sm:$0xff]
  %v31 = vld [vmem:[%s0 + $0x88] sm:$0xff]
  %v32 = vld [vmem:[%s0 + $0x90] sm:$0xff]
  %v33 = vld [vmem:[%s0 + $0x98] sm:$0xff]
  %v34 = vld [vmem:[%s0 + $0xa0] sm:$0xff]
  %v35 = vld [vmem:[%s0 + $0xa8] sm:$0xff]
  %v36 = vld [vmem:[%s0 + $0xb0] sm:$0xff]
  %v37 = vld [vmem:[%s0 + $0xb8] sm:$0xff]
  %v38 = vld [vmem:[%s0 + $0xc0] sm:$0xff]
  %v39 = vld [vmem:[%s0 + $0xc8] sm:$0xff]
  %v40 = vld [vmem:[%s0 + $0xd0] sm:$0xff]
  %v41 = vld [vmem:[%s0 + $0xd8] sm:$0xff]
  %v42 = vld [vmem:[%s0 + $0xe0] sm:$0xff]
  %v43 = vld [vmem:[%s0 + $0xe8] sm:$0xff]
  %v44 = vld [vmem:[%s0 + $0xf0] sm:$0xff]
  %v45 = vld [vmem:[%s0 + $0xf8] sm:$0xff]
  %v46 = vld [vmem:[%s0 + $0x100] sm:$0xff]
  %v47 = vld [vmem:[%s0 + $0x108] sm:$0xff]
  %v48 = vld [vmem:[%s0 + $0x110] sm:$0xff]
  %v49 = vld [vmem:[%s0 + $0x118] sm:$0xff]
  %v50 = vld [vmem:[%s0 + $0x120] sm:$0xff]
  %v51 = vld [vmem:[%s0 + $0x128] sm:$0xff]
  %v52 = vld [vmem:[%s0 + $0x130] sm:$0xff]
  %v53 = vld [vmem:[%s0 + $0x138] sm:$0xff]
  %v54 = vld [vmem:[%s0 + $0x140] sm:$0xff]
  %v55 = vld [vmem:[%s0 + $0x148] sm:$0xff]
  %v56 = vld [vmem:[%s0 + $0x150] sm:$0xff]
  %v57 = vld [vmem:[%s0 + $0x158] sm:$0xff]
  %v58 = vld [vmem:[%s0 + $0x160] sm:$0xff]
  %v59 = vld [vmem:[%s0 + $0x168] sm:$0xff]
  %v60 = vld [vmem:[%s0 + $0x170] sm:$0xff]
  %v61 = vld [vmem:[%s0 + $0x178] sm:$0xff]
  %v62 = vld [vmem:[%s0 + $0x180] sm:$0xff]
  %v63 = vld [vmem:[%s0 + $0x188] sm:$0xff]
  %v64 = vld [vmem:[%s0 + $0x190] sm:$0xff]
  %v65 = vld [vmem:[%s0 + $0x198] sm:$0xff]
  %v66 = vld [vmem:[%s0 + $0x1a0] sm:$0xff]
  %v67 = vld [vmem:[%s0 + $0x1a8] sm:$0xff]
  %v68 = vld [vmem:[%s0 + $0x1b0] sm:$0xff]
  %v69 = vld [vmem:[%s0 + $0x1b8] sm:$0xff]
  %v70 = vld [vmem:[%s0 + $0x1c0] sm:$0xff]
  %v71 = vld [vmem:[%s0 + $0x1c8] sm:$0xff]
  %v72 = vld [vmem:[%s0 + $0x1d0] sm:$0xff]
  %v73 = vld [vmem:[%s0 + $0x1d8] sm:$0xff]
  %v74 = vld [vmem:[%s0 + $0x1e0] sm:$0xff]
  %v75 = vld [vmem:[%s0 + $0x1e8] sm:$0xff]
  %v76 = vld [vmem:[%s0 + $0x1f0] sm:$0xff]
  %v77 = vld [vmem:[%s0 + $0x1f8] sm:$0xff]
  %v78 = vld [vmem:[%s0 + $0x200] sm:$0xff]
  %v79 = vld [vmem:[%s0 + $0x208] sm:$0xff]
  %v80 = vld [vmem:[%s0 + $0x210] sm:$0xff]
  %v81 = vld [vmem:[%s0 + $0x218] sm:$0xff]
  %v82 = vld [vmem:[%s0 + $0x220] sm:$0xff]
  %v83 = vld [vmem:[%s0 + $0x228] sm:$0xff]
  %v84 = vld [vmem:[%s0 + $0x230] sm:$0xff]
  %v85 = vld [vmem:[%s0 + $0x238] sm:$0xff]
  %v86 = vld [vmem:[%s0 + $0x240] sm:$0xff]
  %v87 = vld [vmem:[%s0 + $0x248] sm:$0xff]
  %v88 = vld [vmem:[%s0 + $0x250] sm:$0xff]
  %v89 = vld [vmem:[%s0 + $0x258] sm:$0xff]
  %v90 = vld [vmem:[%s0 + $0x260] sm:$0xff]
  %v91 = vld [vmem:[%s0 + $0x268] sm:$0xff]
  %v92 = vld [vmem:[%s0 + $0x270] sm:$0xff]
  %v93 = vld [vmem:[%s0 + $0x278] sm:$0xff]
  %v94 = vld [vmem:[%s0 + $0x280] sm:$0xff]
  %v95 = vld [vmem:[%s0 + $0x288] sm:$0xff]
  %v96 = vld [vmem:[%s0 + $0x290] sm:$0xff]
  %v97 = vld [vmem:[%s0 + $0x298] sm:$0xff]
  %v98 = vld [vmem:[%s0 + $0x2a0] sm:$0xff]
  %v99 = vld [vmem:[%s0 + $0x2a8] sm:$0xff]
  %v100 = vld [vmem:[%s0 + $0x2b0] sm:$0xff]
  %v101 = vld [vmem:[%s0 + $0x2b8] sm:$0xff]
  %v102 = vld [vmem:[%s0 + $0x2c0] sm:$0xff]
  %v103 = vld [vmem:[%s0 + $0x2c8] sm:$0xff]
  %v104 = vld [vmem:[%s0 + $0x2d0] sm:$0xff]
  %v105 = vld [vmem:[%s0 + $0x2d8] sm:$0xff]
  %v106 = vld [vmem:[%s0 + $0x2e0] sm:$0xff]
  %v107 = vld [vmem:[%s0 + $0x2e8] sm:$0xff]
  %v108 = vld [vmem:[%s0 + $0x2f0] sm:$0xff]
  %v109 = vld [vmem:[%s0 + $0x2f8] sm:$0xff]
  %v110 = vld [vmem:[%s0 + $0x300] sm:$0xff]
  %v111 = vld [vmem:[%s0 + $0x308] sm:$0xff]
  %v112 = vld [vmem:[%s0 + $0x310] sm:$0xff]
  %v113 = vld [vmem:[%s0 + $0x318] sm:$0xff]
  %v114 = vld [vmem:[%s0 + $0x320] sm:$0xff]
  %v115 = vld [vmem:[%s0 + $0x328] sm:$0xff]
  %v116 = vld [vmem:[%s0 + $0x330] sm:$0xff]
  %v117 = vld [vmem:[%s0 + $0x338] sm:$0xff]
  %v118 = vld [vmem:[%s0 + $0x340] sm:$0xff]
  %v119 = vld [vmem:[%s0 + $0x348] sm:$0xff]
  %v120 = vld [vmem:[%s0 + $0x350] sm:$0xff]
  %v121 = vld [vmem:[%s0 + $0x358] sm:$0xff]
  %v122 = vld [vmem:[%s0 + $0x360] sm:$0xff]
  %v123 = vld [vmem:[%s0 + $0x368] sm:$0xff]
  %v124 = vld [vmem:[%s0 + $0x370] sm:$0xff]
  %v125 = vld [vmem:[%s0 + $0x378] sm:$0xff]
  %v126 = vld [vmem:[%s0 + $0x380] sm:$0xff]
  %v127 = vld [vmem:[%s0 + $0x388] sm:$0xff]
  %v128 = vld [vmem:[%s0 + $0x390] sm:$0xff]
  %v129 = vld [vmem:[%s0 + $0x398] sm:$0xff]
  %v130 = vld [vmem:[%s0 + $0x3a0] sm:$0xff]
  %v131 = vld [vmem:[%s0 + $0x3a8] sm:$0xff]
  %v132 = vld [vmem:[%s0 + $0x3b0] sm:$0xff]
  %v133 = vld [vmem:[%s0 + $0x3b8] sm:$0xff]
  %v134 = vld [vmem:[%s0 + $0x3c0] sm:$0xff]
  %v135 = vld [vmem:[%s0 + $0x3c8] sm:$0xff]
  %v136 = vld [vmem:[%s0 + $0x3d0] sm:$0xff]
  %v137 = vld [vmem:[%s0 + $0x3d8] sm:$0xff]
  %v138 = vld [vmem:[%s0 + $0x3e0] sm:$0xff]
  %v139 = vld [vmem:[%s0 + $0x3e8] sm:$0xff]
  %v140 = vld [vmem:[%s0 + $0x3f0] sm:$0xff]
  %v141 = vld [vmem:[%s0 + $0x3f8] sm:$0xff]
  %v142 = vld [vmem:[%s0 + $0x400] sm:$0xff]
  %v143 = vld [vmem:[%s0 + $0x408] sm:$0xff]
  %v144 = vld [vmem:[%s0 + $0x410] sm:$0xff]
  %v145 = vld [vmem:[%s0 + $0x418] sm:$0xff]
  %v146 = vld [vmem:[%s0 + $0x420] sm:$0xff]
  %v147 = vld [vmem:[%s0 + $0x428] sm:$0xff]
  %v148 = vld [vmem:[%s0 + $0x430] sm:$0xff]
  %v149 = vld [vmem:[%s0 + $0x438] sm:$0xff]
  %v150 = vld [vmem:[%s0 + $0x440] sm:$0xff]
  %v151 = vld [vmem:[%s0 + $0x448] sm:$0xff]
  %v152 = vld [vmem:[%s0 + $0x450] sm:$0xff]
  %v153 = vld [vmem:[%s0 + $0x458] sm:$0xff]
  %v154 = vld [vmem:[%s0 + $0x460] sm:$0xff]
  %v155 = vld [vmem:[%s0 + $0x468] sm:$0xff]
  %v156 = vld [vmem:[%s0 + $0x470] sm:$0xff]
  %v157 = vld [vmem:[%s0 + $0x478] sm:$0xff]
  %v158 = vld [vmem:[%s1] sm:$0xff]
  %v159 = vld [vmem:[%s1 + $0x8] sm:$0xff]
  %v160 = vld [vmem:[%s1 + $0x10] sm:$0xff]
  %v161 = vld [vmem:[%s1 + $0x18] sm:$0xff]
  %vm162 = vcmask 261120
  %v164 = vsel %vm162, %v14, 0
  %v167 = vsel %vm162, %v15, 0
  %v170 = vsel %vm162, %v16, 0
  %v173 = vsel %vm162, %v17, 0
  %v176 = vsel %vm162, %v18, 0
  %v179 = vsel %vm162, %v19, 0
  %v182 = vsel %vm162, %v20, 0
  %v185 = vsel %vm162, %v21, 0
  %v188 = vsel %vm162, %v22, 0
  %v191 = vsel %vm162, %v23, 0
  %v194 = vsel %vm162, %v24, 0
  %v197 = vsel %vm162, %v25, 0
  %v200 = vsel %vm162, %v26, 0
  %v203 = vsel %vm162, %v27, 0
  %v206 = vsel %vm162, %v28, 0
  %v209 = vsel %vm162, %v29, 0
  %v212 = vsel %vm162, %v30, 0
  %v215 = vsel %vm162, %v31, 0
  %v218 = vsel %vm162, %v32, 0
  %v221 = vsel %vm162, %v33, 0
  %v224 = vsel %vm162, %v34, 0
  %v227 = vsel %vm162, %v35, 0
  %v230 = vsel %vm162, %v36, 0
  %v233 = vsel %vm162, %v37, 0
  %v236 = vsel %vm162, %v38, 0
  %v239 = vsel %vm162, %v39, 0
  %v242 = vsel %vm162, %v40, 0
  %v245 = vsel %vm162, %v41, 0
  %v248 = vsel %vm162, %v42, 0
  %v251 = vsel %vm162, %v43, 0
  %v254 = vsel %vm162, %v44, 0
  %v257 = vsel %vm162, %v45, 0
  %v260 = vsel %vm162, %v46, 0
  %v263 = vsel %vm162, %v47, 0
  %v266 = vsel %vm162, %v48, 0
  %v269 = vsel %vm162, %v49, 0
  %v272 = vsel %vm162, %v50, 0
  %v275 = vsel %vm162, %v51, 0
  %v278 = vsel %vm162, %v52, 0
  %v281 = vsel %vm162, %v53, 0
  %v284 = vsel %vm162, %v54, 0
  %v287 = vsel %vm162, %v55, 0
  %v290 = vsel %vm162, %v56, 0
  %v293 = vsel %vm162, %v57, 0
  %v296 = vsel %vm162, %v58, 0
  %v299 = vsel %vm162, %v59, 0
  %v302 = vsel %vm162, %v60, 0
  %v305 = vsel %vm162, %v61, 0
  %v308 = vsel %vm162, %v62, 0
  %v311 = vsel %vm162, %v63, 0
  %v314 = vsel %vm162, %v64, 0
  %v317 = vsel %vm162, %v65, 0
  %v320 = vsel %vm162, %v66, 0
  %v323 = vsel %vm162, %v67, 0
  %v326 = vsel %vm162, %v68, 0
  %v329 = vsel %vm162, %v69, 0
  %v332 = vsel %vm162, %v70, 0
  %v335 = vsel %vm162, %v71, 0
  %v338 = vsel %vm162, %v72, 0
  %v341 = vsel %vm162, %v73, 0
  %v344 = vsel %vm162, %v74, 0
  %v347 = vsel %vm162, %v75, 0
  %v350 = vsel %vm162, %v76, 0
  %v353 = vsel %vm162, %v77, 0
  %v356 = vsel %vm162, %v78, 0
  %v359 = vsel %vm162, %v79, 0
  %v362 = vsel %vm162, %v80, 0
  %v365 = vsel %vm162, %v81, 0
  %v368 = vsel %vm162, %v82, 0
  %v371 = vsel %vm162, %v83, 0
  %v374 = vsel %vm162, %v84, 0
  %v377 = vsel %vm162, %v85, 0
  %v380 = vsel %vm162, %v86, 0
  %v383 = vsel %vm162, %v87, 0
  %v386 = vsel %vm162, %v88, 0
  %v389 = vsel %vm162, %v89, 0
  %v392 = vsel %vm162, %v90, 0
  %v395 = vsel %vm162, %v91, 0
  %v398 = vsel %vm162, %v92, 0
  %v401 = vsel %vm162, %v93, 0
  %v404 = vsel %vm162, %v94, 0
  %v407 = vsel %vm162, %v95, 0
  %v410 = vsel %vm162, %v96, 0
  %v413 = vsel %vm162, %v97, 0
  %v416 = vsel %vm162, %v98, 0
  %v419 = vsel %vm162, %v99, 0
  %v422 = vsel %vm162, %v100, 0
  %v425 = vsel %vm162, %v101, 0
  %v428 = vsel %vm162, %v102, 0
  %v431 = vsel %vm162, %v103, 0
  %v434 = vsel %vm162, %v104, 0
  %v437 = vsel %vm162, %v105, 0
  %v440 = vsel %vm162, %v106, 0
  %v443 = vsel %vm162, %v107, 0
  %v446 = vsel %vm162, %v108, 0
  %v449 = vsel %vm162, %v109, 0
  %v452 = vsel %vm162, %v110, 0
  %v455 = vsel %vm162, %v111, 0
  %v458 = vsel %vm162, %v112, 0
  %v461 = vsel %vm162, %v113, 0
  %v464 = vsel %vm162, %v114, 0
  %v467 = vsel %vm162, %v115, 0
  %v470 = vsel %vm162, %v116, 0
  %v473 = vsel %vm162, %v117, 0
  %v476 = vsel %vm162, %v118, 0
  %v479 = vsel %vm162, %v119, 0
  %v482 = vsel %vm162, %v120, 0
  %v485 = vsel %vm162, %v121, 0
  %v488 = vsel %vm162, %v122, 0
  %v491 = vsel %vm162, %v123, 0
  %v494 = vsel %vm162, %v124, 0
  %v497 = vsel %vm162, %v125, 0
  %v500 = vsel %vm162, %v126, 0
  %v503 = vsel %vm162, %v127, 0
  %v506 = vsel %vm162, %v128, 0
  %v509 = vsel %vm162, %v129, 0
  %v512 = vsel %vm162, %v130, 0
  %v515 = vsel %vm162, %v131, 0
  %v518 = vsel %vm162, %v132, 0
  %v521 = vsel %vm162, %v133, 0
  %v524 = vsel %vm162, %v134, 0
  %v527 = vsel %vm162, %v135, 0
  %v530 = vsel %vm162, %v136, 0
  %v533 = vsel %vm162, %v137, 0
  %v536 = vsel %vm162, %v138, 0
  %v539 = vsel %vm162, %v139, 0
  %v542 = vsel %vm162, %v140, 0
  %v545 = vsel %vm162, %v141, 0
  %v548 = vsel %vm162, %v142, 0
  %v551 = vsel %vm162, %v143, 0
  %v554 = vsel %vm162, %v144, 0
  %v557 = vsel %vm162, %v145, 0
  %v560 = vsel %vm162, %v146, 0
  %v563 = vsel %vm162, %v147, 0
  %v566 = vsel %vm162, %v148, 0
  %v569 = vsel %vm162, %v149, 0
  %v572 = vsel %vm162, %v150, 0
  %v575 = vsel %vm162, %v151, 0
  %v578 = vsel %vm162, %v152, 0
  %v581 = vsel %vm162, %v153, 0
  %v584 = vsel %vm162, %v154, 0
  %v587 = vsel %vm162, %v155, 0
  %v590 = vsel %vm162, %v156, 0
  %v593 = vsel %vm162, %v157, 0
  %595 = vmatpush.msra.mxu0 0.0
  %596 = vmatpush.msra.mxu0 0.0
  %597 = vmatpush.msra.mxu0 0.0
  %598 = vmatpush.msra.mxu0 0.0
  %599 = vmatpush.msra.mxu0 0.0
  %600 = vmatpush.msra.mxu0 0.0
  %601 = vmatpush.msra.mxu0 0.0
  %602 = vmatpush.msra.mxu0 0.0
  %603 = vmatpush.msra.mxu0 0.0
  %604 = vmatpush.msra.mxu0 0.0
  %605 = vmatpush.msra.mxu0 0.0
  %606 = vmatpush.msra.mxu0 0.0
  %607 = vmatpush.msra.mxu0 %v161
  %608 = vmatpush.msra.mxu0 %v160
  %609 = vmatpush.msra.mxu0 %v159
  %610 = vmatpush.msra.mxu0 %v158
  %611 = vmatmul.f32.gmra.mxu0 %v164
  %v612 = vpop.f32.mrf.mxu0
  %v613 = vadd.f32 0.0, %v612
  %614 = vmatmul.f32.gmra.mxu0 %v167
  %v615 = vpop.f32.mrf.mxu0
  %v616 = vadd.f32 0.0, %v615
  %617 = vmatmul.f32.gmra.mxu0 %v170
  %v618 = vpop.f32.mrf.mxu0
  %v619 = vadd.f32 0.0, %v618
  %620 = vmatmul.f32.gmra.mxu0 %v173
  %v621 = vpop.f32.mrf.mxu0
  %v622 = vadd.f32 0.0, %v621
  %623 = vmatmul.f32.gmra.mxu0 %v176
  %v624 = vpop.f32.mrf.mxu0
  %v625 = vadd.f32 0.0, %v624
  %626 = vmatmul.f32.gmra.mxu0 %v179
  %v627 = vpop.f32.mrf.mxu0
  %v628 = vadd.f32 0.0, %v627
  %629 = vmatmul.f32.gmra.mxu0 %v182
  %v630 = vpop.f32.mrf.mxu0
  %v631 = vadd.f32 0.0, %v630
  %632 = vmatmul.f32.gmra.mxu0 %v185
  %v633 = vpop.f32.mrf.mxu0
  %v634 = vadd.f32 0.0, %v633
  %635 = vmatmul.f32.gmra.mxu0 %v188
  %v636 = vpop.f32.mrf.mxu0
  %v637 = vadd.f32 0.0, %v636
  %638 = vmatmul.f32.gmra.mxu0 %v191
  %v639 = vpop.f32.mrf.mxu0
  %v640 = vadd.f32 0.0, %v639
  %641 = vmatmul.f32.gmra.mxu0 %v194
  %v642 = vpop.f32.mrf.mxu0
  %v643 = vadd.f32 0.0, %v642
  %644 = vmatmul.f32.gmra.mxu0 %v197
  %v645 = vpop.f32.mrf.mxu0
  %v646 = vadd.f32 0.0, %v645
  %647 = vmatmul.f32.gmra.mxu0 %v200
  %v648 = vpop.f32.mrf.mxu0
  %v649 = vadd.f32 0.0, %v648
  %650 = vmatmul.f32.gmra.mxu0 %v203
  %v651 = vpop.f32.mrf.mxu0
  %v652 = vadd.f32 0.0, %v651
  %653 = vmatmul.f32.gmra.mxu0 %v206
  %v654 = vpop.f32.mrf.mxu0
  %v655 = vadd.f32 0.0, %v654
  %656 = vmatmul.f32.gmra.mxu0 %v209
  %v657 = vpop.f32.mrf.mxu0
  %v658 = vadd.f32 0.0, %v657
  %659 = vmatmul.f32.gmra.mxu0 %v212
  %v660 = vpop.f32.mrf.mxu0
  %v661 = vadd.f32 0.0, %v660
  %662 = vmatmul.f32.gmra.mxu0 %v215
  %v663 = vpop.f32.mrf.mxu0
  %v664 = vadd.f32 0.0, %v663
  %665 = vmatmul.f32.gmra.mxu0 %v218
  %v666 = vpop.f32.mrf.mxu0
  %v667 = vadd.f32 0.0, %v666
  %668 = vmatmul.f32.gmra.mxu0 %v221
  %v669 = vpop.f32.mrf.mxu0
  %v670 = vadd.f32 0.0, %v669
  %671 = vmatmul.f32.gmra.mxu0 %v224
  %v672 = vpop.f32.mrf.mxu0
  %v673 = vadd.f32 0.0, %v672
  %674 = vmatmul.f32.gmra.mxu0 %v227
  %v675 = vpop.f32.mrf.mxu0
  %v676 = vadd.f32 0.0, %v675
  %677 = vmatmul.f32.gmra.mxu0 %v230
  %v678 = vpop.f32.mrf.mxu0
  %v679 = vadd.f32 0.0, %v678
  %680 = vmatmul.f32.gmra.mxu0 %v233
  %v681 = vpop.f32.mrf.mxu0
  %v682 = vadd.f32 0.0, %v681
  %683 = vmatmul.f32.gmra.mxu0 %v236
  %v684 = vpop.f32.mrf.mxu0
  %v685 = vadd.f32 0.0, %v684
  %686 = vmatmul.f32.gmra.mxu0 %v239
  %v687 = vpop.f32.mrf.mxu0
  %v688 = vadd.f32 0.0, %v687
  %689 = vmatmul.f32.gmra.mxu0 %v242
  %v690 = vpop.f32.mrf.mxu0
  %v691 = vadd.f32 0.0, %v690
  %692 = vmatmul.f32.gmra.mxu0 %v245
  %v693 = vpop.f32.mrf.mxu0
  %v694 = vadd.f32 0.0, %v693
  %695 = vmatmul.f32.gmra.mxu0 %v248
  %v696 = vpop.f32.mrf.mxu0
  %v697 = vadd.f32 0.0, %v696
  %698 = vmatmul.f32.gmra.mxu0 %v251
  %v699 = vpop.f32.mrf.mxu0
  %v700 = vadd.f32 0.0, %v699
  %701 = vmatmul.f32.gmra.mxu0 %v254
  %v702 = vpop.f32.mrf.mxu0
  %v703 = vadd.f32 0.0, %v702
  %704 = vmatmul.f32.gmra.mxu0 %v257
  %v705 = vpop.f32.mrf.mxu0
  %v706 = vadd.f32 0.0, %v705
  %707 = vmatmul.f32.gmra.mxu0 %v260
  %v708 = vpop.f32.mrf.mxu0
  %v709 = vadd.f32 0.0, %v708
  %710 = vmatmul.f32.gmra.mxu0 %v263
  %v711 = vpop.f32.mrf.mxu0
  %v712 = vadd.f32 0.0, %v711
  %713 = vmatmul.f32.gmra.mxu0 %v266
  %v714 = vpop.f32.mrf.mxu0
  %v715 = vadd.f32 0.0, %v714
  %716 = vmatmul.f32.gmra.mxu0 %v269
  %v717 = vpop.f32.mrf.mxu0
  %v718 = vadd.f32 0.0, %v717
  %719 = vmatmul.f32.gmra.mxu0 %v272
  %v720 = vpop.f32.mrf.mxu0
  %v721 = vadd.f32 0.0, %v720
  %722 = vmatmul.f32.gmra.mxu0 %v275
  %v723 = vpop.f32.mrf.mxu0
  %v724 = vadd.f32 0.0, %v723
  %725 = vmatmul.f32.gmra.mxu0 %v278
  %v726 = vpop.f32.mrf.mxu0
  %v727 = vadd.f32 0.0, %v726
  %728 = vmatmul.f32.gmra.mxu0 %v281
  %v729 = vpop.f32.mrf.mxu0
  %v730 = vadd.f32 0.0, %v729
  %731 = vmatmul.f32.gmra.mxu0 %v284
  %v732 = vpop.f32.mrf.mxu0
  %v733 = vadd.f32 0.0, %v732
  %734 = vmatmul.f32.gmra.mxu0 %v287
  %v735 = vpop.f32.mrf.mxu0
  %v736 = vadd.f32 0.0, %v735
  %737 = vmatmul.f32.gmra.mxu0 %v290
  %v738 = vpop.f32.mrf.mxu0
  %v739 = vadd.f32 0.0, %v738
  %740 = vmatmul.f32.gmra.mxu0 %v293
  %v741 = vpop.f32.mrf.mxu0
  %v742 = vadd.f32 0.0, %v741
  %743 = vmatmul.f32.gmra.mxu0 %v296
  %v744 = vpop.f32.mrf.mxu0
  %v745 = vadd.f32 0.0, %v744
  %746 = vmatmul.f32.gmra.mxu0 %v299
  %v747 = vpop.f32.mrf.mxu0
  %v748 = vadd.f32 0.0, %v747
  %749 = vmatmul.f32.gmra.mxu0 %v302
  %v750 = vpop.f32.mrf.mxu0
  %v751 = vadd.f32 0.0, %v750
  %752 = vmatmul.f32.gmra.mxu0 %v305
  %v753 = vpop.f32.mrf.mxu0
  %v754 = vadd.f32 0.0, %v753
  %755 = vmatmul.f32.gmra.mxu0 %v308
  %v756 = vpop.f32.mrf.mxu0
  %v757 = vadd.f32 0.0, %v756
  %758 = vmatmul.f32.gmra.mxu0 %v311
  %v759 = vpop.f32.mrf.mxu0
  %v760 = vadd.f32 0.0, %v759
  %761 = vmatmul.f32.gmra.mxu0 %v314
  %v762 = vpop.f32.mrf.mxu0
  %v763 = vadd.f32 0.0, %v762
  %764 = vmatmul.f32.gmra.mxu0 %v317
  %v765 = vpop.f32.mrf.mxu0
  %v766 = vadd.f32 0.0, %v765
  %767 = vmatmul.f32.gmra.mxu0 %v320
  %v768 = vpop.f32.mrf.mxu0
  %v769 = vadd.f32 0.0, %v768
  %770 = vmatmul.f32.gmra.mxu0 %v323
  %v771 = vpop.f32.mrf.mxu0
  %v772 = vadd.f32 0.0, %v771
  %773 = vmatmul.f32.gmra.mxu0 %v326
  %v774 = vpop.f32.mrf.mxu0
  %v775 = vadd.f32 0.0, %v774
  %776 = vmatmul.f32.gmra.mxu0 %v329
  %v777 = vpop.f32.mrf.mxu0
  %v778 = vadd.f32 0.0, %v777
  %779 = vmatmul.f32.gmra.mxu0 %v332
  %v780 = vpop.f32.mrf.mxu0
  %v781 = vadd.f32 0.0, %v780
  %782 = vmatmul.f32.gmra.mxu0 %v335
  %v783 = vpop.f32.mrf.mxu0
  %v784 = vadd.f32 0.0, %v783
  %785 = vmatmul.f32.gmra.mxu0 %v338
  %v786 = vpop.f32.mrf.mxu0
  %v787 = vadd.f32 0.0, %v786
  %788 = vmatmul.f32.gmra.mxu0 %v341
  %v789 = vpop.f32.mrf.mxu0
  %v790 = vadd.f32 0.0, %v789
  %791 = vmatmul.f32.gmra.mxu0 %v344
  %v792 = vpop.f32.mrf.mxu0
  %v793 = vadd.f32 0.0, %v792
  %794 = vmatmul.f32.gmra.mxu0 %v347
  %v795 = vpop.f32.mrf.mxu0
  %v796 = vadd.f32 0.0, %v795
  %797 = vmatmul.f32.gmra.mxu0 %v350
  %v798 = vpop.f32.mrf.mxu0
  %v799 = vadd.f32 0.0, %v798
  %800 = vmatmul.f32.gmra.mxu0 %v353
  %v801 = vpop.f32.mrf.mxu0
  %v802 = vadd.f32 0.0, %v801
  %803 = vmatmul.f32.gmra.mxu0 %v356
  %v804 = vpop.f32.mrf.mxu0
  %v805 = vadd.f32 0.0, %v804
  %806 = vmatmul.f32.gmra.mxu0 %v359
  %v807 = vpop.f32.mrf.mxu0
  %v808 = vadd.f32 0.0, %v807
  %809 = vmatmul.f32.gmra.mxu0 %v362
  %v810 = vpop.f32.mrf.mxu0
  %v811 = vadd.f32 0.0, %v810
  %812 = vmatmul.f32.gmra.mxu0 %v365
  %v813 = vpop.f32.mrf.mxu0
  %v814 = vadd.f32 0.0, %v813
  %815 = vmatmul.f32.gmra.mxu0 %v368
  %v816 = vpop.f32.mrf.mxu0
  %v817 = vadd.f32 0.0, %v816
  %818 = vmatmul.f32.gmra.mxu0 %v371
  %v819 = vpop.f32.mrf.mxu0
  %v820 = vadd.f32 0.0, %v819
  %821 = vmatmul.f32.gmra.mxu0 %v374
  %v822 = vpop.f32.mrf.mxu0
  %v823 = vadd.f32 0.0, %v822
  %824 = vmatmul.f32.gmra.mxu0 %v377
  %v825 = vpop.f32.mrf.mxu0
  %v826 = vadd.f32 0.0, %v825
  %827 = vmatmul.f32.gmra.mxu0 %v380
  %v828 = vpop.f32.mrf.mxu0
  %v829 = vadd.f32 0.0, %v828
  %830 = vmatmul.f32.gmra.mxu0 %v383
  %v831 = vpop.f32.mrf.mxu0
  %v832 = vadd.f32 0.0, %v831
  %833 = vmatmul.f32.gmra.mxu0 %v386
  %v834 = vpop.f32.mrf.mxu0
  %v835 = vadd.f32 0.0, %v834
  %836 = vmatmul.f32.gmra.mxu0 %v389
  %v837 = vpop.f32.mrf.mxu0
  %v838 = vadd.f32 0.0, %v837
  %839 = vmatmul.f32.gmra.mxu0 %v392
  %v840 = vpop.f32.mrf.mxu0
  %v841 = vadd.f32 0.0, %v840
  %842 = vmatmul.f32.gmra.mxu0 %v395
  %v843 = vpop.f32.mrf.mxu0
  %v844 = vadd.f32 0.0, %v843
  %845 = vmatmul.f32.gmra.mxu0 %v398
  %v846 = vpop.f32.mrf.mxu0
  %v847 = vadd.f32 0.0, %v846
  %848 = vmatmul.f32.gmra.mxu0 %v401
  %v849 = vpop.f32.mrf.mxu0
  %v850 = vadd.f32 0.0, %v849
  %851 = vmatmul.f32.gmra.mxu0 %v404
  %v852 = vpop.f32.mrf.mxu0
  %v853 = vadd.f32 0.0, %v852
  %854 = vmatmul.f32.gmra.mxu0 %v407
  %v855 = vpop.f32.mrf.mxu0
  %v856 = vadd.f32 0.0, %v855
  %857 = vmatmul.f32.gmra.mxu0 %v410
  %v858 = vpop.f32.mrf.mxu0
  %v859 = vadd.f32 0.0, %v858
  %860 = vmatmul.f32.gmra.mxu0 %v413
  %v861 = vpop.f32.mrf.mxu0
  %v862 = vadd.f32 0.0, %v861
  %863 = vmatmul.f32.gmra.mxu0 %v416
  %v864 = vpop.f32.mrf.mxu0
  %v865 = vadd.f32 0.0, %v864
  %866 = vmatmul.f32.gmra.mxu0 %v419
  %v867 = vpop.f32.mrf.mxu0
  %v868 = vadd.f32 0.0, %v867
  %869 = vmatmul.f32.gmra.mxu0 %v422
  %v870 = vpop.f32.mrf.mxu0
  %v871 = vadd.f32 0.0, %v870
  %872 = vmatmul.f32.gmra.mxu0 %v425
  %v873 = vpop.f32.mrf.mxu0
  %v874 = vadd.f32 0.0, %v873
  %875 = vmatmul.f32.gmra.mxu0 %v428
  %v876 = vpop.f32.mrf.mxu0
  %v877 = vadd.f32 0.0, %v876
  %878 = vmatmul.f32.gmra.mxu0 %v431
  %v879 = vpop.f32.mrf.mxu0
  %v880 = vadd.f32 0.0, %v879
  %881 = vmatmul.f32.gmra.mxu0 %v434
  %v882 = vpop.f32.mrf.mxu0
  %v883 = vadd.f32 0.0, %v882
  %884 = vmatmul.f32.gmra.mxu0 %v437
  %v885 = vpop.f32.mrf.mxu0
  %v886 = vadd.f32 0.0, %v885
  %887 = vmatmul.f32.gmra.mxu0 %v440
  %v888 = vpop.f32.mrf.mxu0
  %v889 = vadd.f32 0.0, %v888
  %890 = vmatmul.f32.gmra.mxu0 %v443
  %v891 = vpop.f32.mrf.mxu0
  %v892 = vadd.f32 0.0, %v891
  %893 = vmatmul.f32.gmra.mxu0 %v446
  %v894 = vpop.f32.mrf.mxu0
  %v895 = vadd.f32 0.0, %v894
  %896 = vmatmul.f32.gmra.mxu0 %v449
  %v897 = vpop.f32.mrf.mxu0
  %v898 = vadd.f32 0.0, %v897
  %899 = vmatmul.f32.gmra.mxu0 %v452
  %v900 = vpop.f32.mrf.mxu0
  %v901 = vadd.f32 0.0, %v900
  %902 = vmatmul.f32.gmra.mxu0 %v455
  %v903 = vpop.f32.mrf.mxu0
  %v904 = vadd.f32 0.0, %v903
  %905 = vmatmul.f32.gmra.mxu0 %v458
  %v906 = vpop.f32.mrf.mxu0
  %v907 = vadd.f32 0.0, %v906
  %908 = vmatmul.f32.gmra.mxu0 %v461
  %v909 = vpop.f32.mrf.mxu0
  %v910 = vadd.f32 0.0, %v909
  %911 = vmatmul.f32.gmra.mxu0 %v464
  %v912 = vpop.f32.mrf.mxu0
  %v913 = vadd.f32 0.0, %v912
  %914 = vmatmul.f32.gmra.mxu0 %v467
  %v915 = vpop.f32.mrf.mxu0
  %v916 = vadd.f32 0.0, %v915
  %917 = vmatmul.f32.gmra.mxu0 %v470
  %v918 = vpop.f32.mrf.mxu0
  %v919 = vadd.f32 0.0, %v918
  %920 = vmatmul.f32.gmra.mxu0 %v473
  %v921 = vpop.f32.mrf.mxu0
  %v922 = vadd.f32 0.0, %v921
  %923 = vmatmul.f32.gmra.mxu0 %v476
  %v924 = vpop.f32.mrf.mxu0
  %v925 = vadd.f32 0.0, %v924
  %926 = vmatmul.f32.gmra.mxu0 %v479
  %v927 = vpop.f32.mrf.mxu0
  %v928 = vadd.f32 0.0, %v927
  %929 = vmatmul.f32.gmra.mxu0 %v482
  %v930 = vpop.f32.mrf.mxu0
  %v931 = vadd.f32 0.0, %v930
  %932 = vmatmul.f32.gmra.mxu0 %v485
  %v933 = vpop.f32.mrf.mxu0
  %v934 = vadd.f32 0.0, %v933
  %935 = vmatmul.f32.gmra.mxu0 %v488
  %v936 = vpop.f32.mrf.mxu0
  %v937 = vadd.f32 0.0, %v936
  %938 = vmatmul.f32.gmra.mxu0 %v491
  %v939 = vpop.f32.mrf.mxu0
  %v940 = vadd.f32 0.0, %v939
  %941 = vmatmul.f32.gmra.mxu0 %v494
  %v942 = vpop.f32.mrf.mxu0
  %v943 = vadd.f32 0.0, %v942
  %944 = vmatmul.f32.gmra.mxu0 %v497
  %v945 = vpop.f32.mrf.mxu0
  %v946 = vadd.f32 0.0, %v945
  %947 = vmatmul.f32.gmra.mxu0 %v500
  %v948 = vpop.f32.mrf.mxu0
  %v949 = vadd.f32 0.0, %v948
  %950 = vmatmul.f32.gmra.mxu0 %v503
  %v951 = vpop.f32.mrf.mxu0
  %v952 = vadd.f32 0.0, %v951
  %953 = vmatmul.f32.gmra.mxu0 %v506
  %v954 = vpop.f32.mrf.mxu0
  %v955 = vadd.f32 0.0, %v954
  %956 = vmatmul.f32.gmra.mxu0 %v509
  %v957 = vpop.f32.mrf.mxu0
  %v958 = vadd.f32 0.0, %v957
  %959 = vmatmul.f32.gmra.mxu0 %v512
  %v960 = vpop.f32.mrf.mxu0
  %v961 = vadd.f32 0.0, %v960
  %962 = vmatmul.f32.gmra.mxu0 %v515
  %v963 = vpop.f32.mrf.mxu0
  %v964 = vadd.f32 0.0, %v963
  %965 = vmatmul.f32.gmra.mxu0 %v518
  %v966 = vpop.f32.mrf.mxu0
  %v967 = vadd.f32 0.0, %v966
  %968 = vmatmul.f32.gmra.mxu0 %v521
  %v969 = vpop.f32.mrf.mxu0
  %v970 = vadd.f32 0.0, %v969
  %971 = vmatmul.f32.gmra.mxu0 %v524
  %v972 = vpop.f32.mrf.mxu0
  %v973 = vadd.f32 0.0, %v972
  %974 = vmatmul.f32.gmra.mxu0 %v527
  %v975 = vpop.f32.mrf.mxu0
  %v976 = vadd.f32 0.0, %v975
  %977 = vmatmul.f32.gmra.mxu0 %v530
  %v978 = vpop.f32.mrf.mxu0
  %v979 = vadd.f32 0.0, %v978
  %980 = vmatmul.f32.gmra.mxu0 %v533
  %v981 = vpop.f32.mrf.mxu0
  %v982 = vadd.f32 0.0, %v981
  %983 = vmatmul.f32.gmra.mxu0 %v536
  %v984 = vpop.f32.mrf.mxu0
  %v985 = vadd.f32 0.0, %v984
  %986 = vmatmul.f32.gmra.mxu0 %v539
  %v987 = vpop.f32.mrf.mxu0
  %v988 = vadd.f32 0.0, %v987
  %989 = vmatmul.f32.gmra.mxu0 %v542
  %v990 = vpop.f32.mrf.mxu0
  %v991 = vadd.f32 0.0, %v990
  %992 = vmatmul.f32.gmra.mxu0 %v545
  %v993 = vpop.f32.mrf.mxu0
  %v994 = vadd.f32 0.0, %v993
  %995 = vmatmul.f32.gmra.mxu0 %v548
  %v996 = vpop.f32.mrf.mxu0
  %v997 = vadd.f32 0.0, %v996
  %998 = vmatmul.f32.gmra.mxu0 %v551
  %v999 = vpop.f32.mrf.mxu0
  %v1000 = vadd.f32 0.0, %v999
  %1001 = vmatmul.f32.gmra.mxu0 %v554
  %v1002 = vpop.f32.mrf.mxu0
  %v1003 = vadd.f32 0.0, %v1002
  %1004 = vmatmul.f32.gmra.mxu0 %v557
  %v1005 = vpop.f32.mrf.mxu0
  %v1006 = vadd.f32 0.0, %v1005
  %1007 = vmatmul.f32.gmra.mxu0 %v560
  %v1008 = vpop.f32.mrf.mxu0
  %v1009 = vadd.f32 0.0, %v1008
  %1010 = vmatmul.f32.gmra.mxu0 %v563
  %v1011 = vpop.f32.mrf.mxu0
  %v1012 = vadd.f32 0.0, %v1011
  %1013 = vmatmul.f32.gmra.mxu0 %v566
  %v1014 = vpop.f32.mrf.mxu0
  %v1015 = vadd.f32 0.0, %v1014
  %1016 = vmatmul.f32.gmra.mxu0 %v569
  %v1017 = vpop.f32.mrf.mxu0
  %v1018 = vadd.f32 0.0, %v1017
  %1019 = vmatmul.f32.gmra.mxu0 %v572
  %v1020 = vpop.f32.mrf.mxu0
  %v1021 = vadd.f32 0.0, %v1020
  %1022 = vmatmul.f32.gmra.mxu0 %v575
  %v1023 = vpop.f32.mrf.mxu0
  %v1024 = vadd.f32 0.0, %v1023
  %1025 = vmatmul.f32.gmra.mxu0 %v578
  %v1026 = vpop.f32.mrf.mxu0
  %v1027 = vadd.f32 0.0, %v1026
  %1028 = vmatmul.f32.gmra.mxu0 %v581
  %v1029 = vpop.f32.mrf.mxu0
  %v1030 = vadd.f32 0.0, %v1029
  %1031 = vmatmul.f32.gmra.mxu0 %v584
  %v1032 = vpop.f32.mrf.mxu0
  %v1033 = vadd.f32 0.0, %v1032
  %1034 = vmatmul.f32.gmra.mxu0 %v587
  %v1035 = vpop.f32.mrf.mxu0
  %v1036 = vadd.f32 0.0, %v1035
  %1037 = vmatmul.f32.gmra.mxu0 %v590
  %v1038 = vpop.f32.mrf.mxu0
  %v1039 = vadd.f32 0.0, %v1038
  %1040 = vmatmul.f32.gmra.mxu0 %v593
  %v1041 = vpop.f32.mrf.mxu0
  %v1042 = vadd.f32 0.0, %v1041
  %1043 = vdwg.mxu0
  %v1044 = vmax.f32 %v613, %v667
  %v1045 = vmax.f32 %v616, %v670
  %v1046 = vmax.f32 %v619, %v673
  %v1047 = vmax.f32 %v622, %v676
  %v1048 = vmax.f32 %v625, %v679
  %v1049 = vmax.f32 %v628, %v682
  %v1050 = vmax.f32 %v631, %v685
  %v1051 = vmax.f32 %v634, %v688
  %v1052 = vmax.f32 %v637, %v691
  %v1053 = vmax.f32 %v640, %v694
  %v1054 = vmax.f32 %v643, %v697
  %v1055 = vmax.f32 %v646, %v700
  %v1056 = vmax.f32 %v649, %v703
  %v1057 = vmax.f32 %v652, %v706
  %v1058 = vmax.f32 %v655, %v709
  %v1059 = vmax.f32 %v658, %v712
  %v1060 = vmax.f32 %v661, %v715
  %v1061 = vmax.f32 %v664, %v718
  %v1062 = vmax.f32 %v829, %v883
  %v1063 = vmax.f32 %v832, %v886
  %v1064 = vmax.f32 %v835, %v889
  %v1065 = vmax.f32 %v838, %v892
  %v1066 = vmax.f32 %v841, %v895
  %v1067 = vmax.f32 %v844, %v898
  %v1068 = vmax.f32 %v847, %v901
  %v1069 = vmax.f32 %v850, %v904
  %v1070 = vmax.f32 %v853, %v907
  %v1071 = vmax.f32 %v856, %v910
  %v1072 = vmax.f32 %v859, %v913
  %v1073 = vmax.f32 %v862, %v916
  %v1074 = vmax.f32 %v865, %v919
  %v1075 = vmax.f32 %v868, %v922
  %v1076 = vmax.f32 %v871, %v925
  %v1077 = vmax.f32 %v874, %v928
  %v1078 = vmax.f32 %v877, %v931
  %v1079 = vmax.f32 %v880, %v934
  %v1080 = vmax.f32 %v721, %v775
  %v1081 = vmax.f32 %v724, %v778
  %v1082 = vmax.f32 %v727, %v781
  %v1083 = vmax.f32 %v730, %v784
  %v1084 = vmax.f32 %v733, %v787
  %v1085 = vmax.f32 %v736, %v790
  %v1086 = vmax.f32 %v739, %v793
  %v1087 = vmax.f32 %v742, %v796
  %v1088 = vmax.f32 %v745, %v799
  %v1089 = vmax.f32 %v748, %v802
  %v1090 = vmax.f32 %v751, %v805
  %v1091 = vmax.f32 %v754, %v808
  %v1092 = vmax.f32 %v757, %v811
  %v1093 = vmax.f32 %v760, %v814
  %v1094 = vmax.f32 %v763, %v817
  %v1095 = vmax.f32 %v766, %v820
  %v1096 = vmax.f32 %v769, %v823
  %v1097 = vmax.f32 %v772, %v826
  %v1098 = vmax.f32 %v937, %v991
  %v1099 = vmax.f32 %v940, %v994
  %v1100 = vmax.f32 %v943, %v997
  %v1101 = vmax.f32 %v946, %v1000
  %v1102 = vmax.f32 %v949, %v1003
  %v1103 = vmax.f32 %v952, %v1006
  %v1104 = vmax.f32 %v955, %v1009
  %v1105 = vmax.f32 %v958, %v1012
  %v1106 = vmax.f32 %v961, %v1015
  %v1107 = vmax.f32 %v964, %v1018
  %v1108 = vmax.f32 %v967, %v1021
  %v1109 = vmax.f32 %v970, %v1024
  %v1110 = vmax.f32 %v973, %v1027
  %v1111 = vmax.f32 %v976, %v1030
  %v1112 = vmax.f32 %v979, %v1033
  %v1113 = vmax.f32 %v982, %v1036
  %v1114 = vmax.f32 %v985, %v1039
  %v1115 = vmax.f32 %v988, %v1042
  %v1116 = vmax.f32 %v1044, %v1080
  %v1117 = vmax.f32 %v1045, %v1081
  %v1118 = vmax.f32 %v1046, %v1082
  %v1119 = vmax.f32 %v1047, %v1083
  %v1120 = vmax.f32 %v1048, %v1084
  %v1121 = vmax.f32 %v1049, %v1085
  %v1122 = vmax.f32 %v1050, %v1086
  %v1123 = vmax.f32 %v1051, %v1087
  %v1124 = vmax.f32 %v1052, %v1088
  %v1125 = vmax.f32 %v1053, %v1089
  %v1126 = vmax.f32 %v1054, %v1090
  %v1127 = vmax.f32 %v1055, %v1091
  %v1128 = vmax.f32 %v1056, %v1092
  %v1129 = vmax.f32 %v1057, %v1093
  %v1130 = vmax.f32 %v1058, %v1094
  %v1131 = vmax.f32 %v1059, %v1095
  %v1132 = vmax.f32 %v1060, %v1096
  %v1133 = vmax.f32 %v1061, %v1097
  %v1134 = vmax.f32 %v1062, %v1098
  %v1135 = vmax.f32 %v1063, %v1099
  %v1136 = vmax.f32 %v1064, %v1100
  %v1137 = vmax.f32 %v1065, %v1101
  %v1138 = vmax.f32 %v1066, %v1102
  %v1139 = vmax.f32 %v1067, %v1103
  %v1140 = vmax.f32 %v1068, %v1104
  %v1141 = vmax.f32 %v1069, %v1105
  %v1142 = vmax.f32 %v1070, %v1106
  %v1143 = vmax.f32 %v1071, %v1107
  %v1144 = vmax.f32 %v1072, %v1108
  %v1145 = vmax.f32 %v1073, %v1109
  %v1146 = vmax.f32 %v1074, %v1110
  %v1147 = vmax.f32 %v1075, %v1111
  %v1148 = vmax.f32 %v1076, %v1112
  %v1149 = vmax.f32 %v1077, %v1113
  %v1150 = vmax.f32 %v1078, %v1114
  %v1151 = vmax.f32 %v1079, %v1115
  %v1152 = vld [vmem:[%s2] sm:$0x1]
  %v1154 = vperm.slane %v1152, 0
  %v1156 = vadd.f32 %v1116, %v1154
  %v1157 = vadd.f32 %v1117, %v1154
  %v1158 = vadd.f32 %v1118, %v1154
  %v1159 = vadd.f32 %v1119, %v1154
  %v1160 = vadd.f32 %v1120, %v1154
  %v1161 = vadd.f32 %v1121, %v1154
  %v1162 = vadd.f32 %v1122, %v1154
  %v1163 = vadd.f32 %v1123, %v1154
  %v1164 = vadd.f32 %v1124, %v1154
  %v1165 = vadd.f32 %v1125, %v1154
  %v1166 = vadd.f32 %v1126, %v1154
  %v1167 = vadd.f32 %v1127, %v1154
  %v1168 = vadd.f32 %v1128, %v1154
  %v1169 = vadd.f32 %v1129, %v1154
  %v1170 = vadd.f32 %v1130, %v1154
  %v1171 = vadd.f32 %v1131, %v1154
  %v1172 = vadd.f32 %v1132, %v1154
  %v1173 = vadd.f32 %v1133, %v1154
  %v1174 = vadd.f32 %v1134, %v1154
  %v1175 = vadd.f32 %v1135, %v1154
  %v1176 = vadd.f32 %v1136, %v1154
  %v1177 = vadd.f32 %v1137, %v1154
  %v1178 = vadd.f32 %v1138, %v1154
  %v1179 = vadd.f32 %v1139, %v1154
  %v1180 = vadd.f32 %v1140, %v1154
  %v1181 = vadd.f32 %v1141, %v1154
  %v1182 = vadd.f32 %v1142, %v1154
  %v1183 = vadd.f32 %v1143, %v1154
  %v1184 = vadd.f32 %v1144, %v1154
  %v1185 = vadd.f32 %v1145, %v1154
  %v1186 = vadd.f32 %v1146, %v1154
  %v1187 = vadd.f32 %v1147, %v1154
  %v1188 = vadd.f32 %v1148, %v1154
  %v1189 = vadd.f32 %v1149, %v1154
  %v1190 = vadd.f32 %v1150, %v1154
  %v1191 = vadd.f32 %v1151, %v1154
  %v1192 = vmax.f32 %v1156, 0.0
  %v1193 = vmax.f32 %v1157, 0.0
  %v1194 = vmax.f32 %v1158, 0.0
  %v1195 = vmax.f32 %v1159, 0.0
  %v1196 = vmax.f32 %v1160, 0.0
  %v1197 = vmax.f32 %v1161, 0.0
  %v1198 = vmax.f32 %v1162, 0.0
  %v1199 = vmax.f32 %v1163, 0.0
  %v1200 = vmax.f32 %v1164, 0.0
  %v1201 = vmax.f32 %v1165, 0.0
  %v1202 = vmax.f32 %v1166, 0.0
  %v1203 = vmax.f32 %v1167, 0.0
  %v1204 = vmax.f32 %v1168, 0.0
  %v1205 = vmax.f32 %v1169, 0.0
  %v1206 = vmax.f32 %v1170, 0.0
  %v1207 = vmax.f32 %v1171, 0.0
  %v1208 = vmax.f32 %v1172, 0.0
  %v1209 = vmax.f32 %v1173, 0.0
  %v1210 = vmax.f32 %v1174, 0.0
  %v1211 = vmax.f32 %v1175, 0.0
  %v1212 = vmax.f32 %v1176, 0.0
  %v1213 = vmax.f32 %v1177, 0.0
  %v1214 = vmax.f32 %v1178, 0.0
  %v1215 = vmax.f32 %v1179, 0.0
  %v1216 = vmax.f32 %v1180, 0.0
  %v1217 = vmax.f32 %v1181, 0.0
  %v1218 = vmax.f32 %v1182, 0.0
  %v1219 = vmax.f32 %v1183, 0.0
  %v1220 = vmax.f32 %v1184, 0.0
  %v1221 = vmax.f32 %v1185, 0.0
  %v1222 = vmax.f32 %v1186, 0.0
  %v1223 = vmax.f32 %v1187, 0.0
  %v1224 = vmax.f32 %v1188, 0.0
  %v1225 = vmax.f32 %v1189, 0.0
  %v1226 = vmax.f32 %v1190, 0.0
  %v1227 = vmax.f32 %v1191, 0.0
  %vm1228 = vcmask 130048
  %1229 = vst.msk [vmem:[%s3] sm:$0xff] %vm1228, %v1192
  %1230 = vst.msk [vmem:[%s3 + $0x8] sm:$0xff] %vm1228, %v1193
  %1231 = vst.msk [vmem:[%s3 + $0x10] sm:$0xff] %vm1228, %v1194
  %1232 = vst.msk [vmem:[%s3 + $0x18] sm:$0xff] %vm1228, %v1195
  %1233 = vst.msk [vmem:[%s3 + $0x20] sm:$0xff] %vm1228, %v1196
  %1234 = vst.msk [vmem:[%s3 + $0x28] sm:$0xff] %vm1228, %v1197
  %1235 = vst.msk [vmem:[%s3 + $0x30] sm:$0xff] %vm1228, %v1198
  %1236 = vst.msk [vmem:[%s3 + $0x38] sm:$0xff] %vm1228, %v1199
  %1237 = vst.msk [vmem:[%s3 + $0x40] sm:$0xff] %vm1228, %v1200
  %1238 = vst.msk [vmem:[%s3 + $0x48] sm:$0xff] %vm1228, %v1201
  %1239 = vst.msk [vmem:[%s3 + $0x50] sm:$0xff] %vm1228, %v1202
  %1240 = vst.msk [vmem:[%s3 + $0x58] sm:$0xff] %vm1228, %v1203
  %1241 = vst.msk [vmem:[%s3 + $0x60] sm:$0xff] %vm1228, %v1204
  %1242 = vst.msk [vmem:[%s3 + $0x68] sm:$0xff] %vm1228, %v1205
  %1243 = vst.msk [vmem:[%s3 + $0x70] sm:$0xff] %vm1228, %v1206
  %1244 = vst.msk [vmem:[%s3 + $0x78] sm:$0xff] %vm1228, %v1207
  %1245 = vst.msk [vmem:[%s3 + $0x80] sm:$0xff] %vm1228, %v1208
  %1246 = vst.msk [vmem:[%s3 + $0x88] sm:$0xff] %vm1228, %v1209
  %1247 = vst.msk [vmem:[%s3 + $0x90] sm:$0xff] %vm1228, %v1210
  %1248 = vst.msk [vmem:[%s3 + $0x98] sm:$0xff] %vm1228, %v1211
  %1249 = vst.msk [vmem:[%s3 + $0xa0] sm:$0xff] %vm1228, %v1212
  %1250 = vst.msk [vmem:[%s3 + $0xa8] sm:$0xff] %vm1228, %v1213
  %1251 = vst.msk [vmem:[%s3 + $0xb0] sm:$0xff] %vm1228, %v1214
  %1252 = vst.msk [vmem:[%s3 + $0xb8] sm:$0xff] %vm1228, %v1215
  %1253 = vst.msk [vmem:[%s3 + $0xc0] sm:$0xff] %vm1228, %v1216
  %1254 = vst.msk [vmem:[%s3 + $0xc8] sm:$0xff] %vm1228, %v1217
  %1255 = vst.msk [vmem:[%s3 + $0xd0] sm:$0xff] %vm1228, %v1218
  %1256 = vst.msk [vmem:[%s3 + $0xd8] sm:$0xff] %vm1228, %v1219
  %1257 = vst.msk [vmem:[%s3 + $0xe0] sm:$0xff] %vm1228, %v1220
  %1258 = vst.msk [vmem:[%s3 + $0xe8] sm:$0xff] %vm1228, %v1221
  %1259 = vst.msk [vmem:[%s3 + $0xf0] sm:$0xff] %vm1228, %v1222
  %1260 = vst.msk [vmem:[%s3 + $0xf8] sm:$0xff] %vm1228, %v1223
  %1261 = vst.msk [vmem:[%s3 + $0x100] sm:$0xff] %vm1228, %v1224
  %1262 = vst.msk [vmem:[%s3 + $0x108] sm:$0xff] %vm1228, %v1225
  %1263 = vst.msk [vmem:[%s3 + $0x110] sm:$0xff] %vm1228, %v1226
  %1264 = vst.msk [vmem:[%s3 + $0x118] sm:$0xff] %vm1228, %v1227
  // Predicated region
  $region14: #{cnn_forward.2} parent=0 // pred_check
    _
  $region15: #{cnn_forward.2} parent=0 // pred_check_branch
    %1266 = sbr.rel (0) target = $region17
  $region16: #{cnn_forward.2} parent=0 // pred_region
    _
  $region17: #{cnn_forward.2} parent=0 // pred_fallthru
    _
  // Predicated region
  $region18: #{cnn_forward.2} parent=0 // pred_check
    _
  $region19: #{cnn_forward.2} parent=0 // pred_check_branch
    %1268 = sbr.rel (0) target = $region21
  $region20: #{cnn_forward.2} parent=0 // pred_region
    _
  $region21: #{cnn_forward.2} parent=0 // pred_fallthru
    _

// kernel: cnn_forward.3
$region0: #{cnn_forward.3}
  #allocation0 [shape = 'u32[]', space=smem, size = 0x4, offset = 0x4, fixed_abs, tag = 'smem constant byte address 0x4 - core index']
  #allocation1 [shape = 'u32[72,128]{1,0:T(1,128)}', space=vmem, size = 0x9000, scoped, tag = 'internal scratch']
  %s0 = inlined_call_operand.vmem [shape: f32[2,4,16,400], index: 0, kind: input, shape index: {}]
  %s1 = inlined_call_operand.vmem [shape: f32[400,32], index: 1, kind: input, shape index: {}]
  %s2 = inlined_call_operand.vmem [shape: f32[1,32], index: 2, kind: input, shape index: {}]
  %s3 = inlined_call_operand.vmem [shape: f32[16,32,128], index: 3, kind: input, shape index: {}]
  %s4 = inlined_call_operand.vmem [shape: f32[1,128], index: 4, kind: input, shape index: {}]
  %s5 = inlined_call_operand.hbm [shape: f32[2,128], index: 5, kind: output, shape index: {}]
  %s6 = sld [smem:[#allocation0]]
  $region30: #{cnn_forward.3} parent=0
    _
  %s8 = ssub.s32 1, %s6
  %s9 = scalar_select 0, %s8, %s6
  $region1: #{cnn_forward.3} parent=0
    #allocation2 [shape = 'u8[1024]{0}', space=vmem, size = 0x400, scoped, tag = 'output window, operand 0, single buffered']
    #allocation3 [shape = 's32[1]{0}', space=sflag, size = 0x4, scoped, tag = 'scoped memory for cnn_forward.3']
    %10 = vsyncpa [#allocation3], 0
    // Predicated region
    $region2: #{cnn_forward.3} parent=1 // pred_check
      _
    $region3: #{cnn_forward.3} parent=1 // pred_check_branch
      %12 = sbr.rel (0) target = $region5
    $region4: #{cnn_forward.3} parent=1 // pred_region
      _
    $region5: #{cnn_forward.3} parent=1 // pred_fallthru
      _
    // Predicated region
    $region6: #{cnn_forward.3} parent=1 // pred_check
      _
    $region7: #{cnn_forward.3} parent=1 // pred_check_branch
      %14 = sbr.rel (0) target = $region9
    $region8: #{cnn_forward.3} parent=1 // pred_region
      _
    $region9: #{cnn_forward.3} parent=1 // pred_fallthru
      _
    // Predicated region
    $region10: #{cnn_forward.3} parent=1 // pred_check
      _
    $region11: #{cnn_forward.3} parent=1 // pred_check_branch
      %16 = sbr.rel (0) target = $region13
    $region12: #{cnn_forward.3} parent=1 // pred_region
      _
    $region13: #{cnn_forward.3} parent=1 // pred_fallthru
      _
    // Predicated region
    $region14: #{cnn_forward.3} parent=1 // pred_check
      _
    $region15: #{cnn_forward.3} parent=1 // pred_check_branch
      %18 = sbr.rel (0) target = $region17
    $region16: #{cnn_forward.3} parent=1 // pred_region
      _
    $region17: #{cnn_forward.3} parent=1 // pred_fallthru
      _
    // Predicated region
    $region18: #{cnn_forward.3} parent=1 // pred_check
      _
    $region19: #{cnn_forward.3} parent=1 // pred_check_branch
      %20 = sbr.rel (0) target = $region21
    $region20: #{cnn_forward.3} parent=1 // pred_region
      _
    $region21: #{cnn_forward.3} parent=1 // pred_fallthru
      _
    %v21 = vld [vmem:[%s0] sm:$0xff]
    %v22 = vld [vmem:[%s0 + $0x8] sm:$0xff]
    %v23 = vld [vmem:[%s0 + $0x10] sm:$0xff]
    %v24 = vld [vmem:[%s0 + $0x18] sm:$0xff]
    %v25 = vld [vmem:[%s0 + $0x20] sm:$0xff]
    %v26 = vld [vmem:[%s0 + $0x28] sm:$0xff]
    %v27 = vld [vmem:[%s0 + $0x30] sm:$0xff]
    %v28 = vld [vmem:[%s0 + $0x38] sm:$0xff]
    %v29 = vld [vmem:[%s0 + $0x40] sm:$0xff]
    %v30 = vld [vmem:[%s0 + $0x48] sm:$0xff]
    %v31 = vld [vmem:[%s0 + $0x50] sm:$0xff]
    %v32 = vld [vmem:[%s0 + $0x58] sm:$0xff]
    %v33 = vld [vmem:[%s0 + $0x60] sm:$0xff]
    %v34 = vld [vmem:[%s0 + $0x68] sm:$0xff]
    %v35 = vld [vmem:[%s0 + $0x70] sm:$0xff]
    %v36 = vld [vmem:[%s0 + $0x78] sm:$0xff]
    %v37 = vld [vmem:[%s0 + $0x80] sm:$0xff]
    %v38 = vld [vmem:[%s0 + $0x88] sm:$0xff]
    %v39 = vld [vmem:[%s0 + $0x90] sm:$0xff]
    %v40 = vld [vmem:[%s0 + $0x98] sm:$0xff]
    %v41 = vld [vmem:[%s0 + $0xa0] sm:$0xff]
    %v42 = vld [vmem:[%s0 + $0xa8] sm:$0xff]
    %v43 = vld [vmem:[%s0 + $0xb0] sm:$0xff]
    %v44 = vld [vmem:[%s0 + $0xb8] sm:$0xff]
    %v45 = vld [vmem:[%s0 + $0xc0] sm:$0xff]
    %v46 = vld [vmem:[%s0 + $0xc8] sm:$0xff]
    %v47 = vld [vmem:[%s0 + $0xd0] sm:$0xff]
    %v48 = vld [vmem:[%s0 + $0xd8] sm:$0xff]
    %v49 = vld [vmem:[%s0 + $0xe0] sm:$0xff]
    %v50 = vld [vmem:[%s0 + $0xe8] sm:$0xff]
    %v51 = vld [vmem:[%s0 + $0xf0] sm:$0xff]
    %v52 = vld [vmem:[%s0 + $0xf8] sm:$0xff]
    %v53 = vld [vmem:[%s0 + $0x100] sm:$0xff]
    %v54 = vld [vmem:[%s0 + $0x108] sm:$0xff]
    %v55 = vld [vmem:[%s0 + $0x110] sm:$0xff]
    %v56 = vld [vmem:[%s0 + $0x118] sm:$0xff]
    %v57 = vld [vmem:[%s0 + $0x120] sm:$0xff]
    %v58 = vld [vmem:[%s0 + $0x128] sm:$0xff]
    %v59 = vld [vmem:[%s0 + $0x130] sm:$0xff]
    %v60 = vld [vmem:[%s0 + $0x138] sm:$0xff]
    %v61 = vld [vmem:[%s0 + $0x140] sm:$0xff]
    %v62 = vld [vmem:[%s0 + $0x148] sm:$0xff]
    %v63 = vld [vmem:[%s0 + $0x150] sm:$0xff]
    %v64 = vld [vmem:[%s0 + $0x158] sm:$0xff]
    %v65 = vld [vmem:[%s0 + $0x160] sm:$0xff]
    %v66 = vld [vmem:[%s0 + $0x168] sm:$0xff]
    %v67 = vld [vmem:[%s0 + $0x170] sm:$0xff]
    %v68 = vld [vmem:[%s0 + $0x178] sm:$0xff]
    %v69 = vld [vmem:[%s0 + $0x180] sm:$0xff]
    %v70 = vld [vmem:[%s0 + $0x188] sm:$0xff]
    %v71 = vld [vmem:[%s0 + $0x190] sm:$0xff]
    %v72 = vld [vmem:[%s0 + $0x198] sm:$0xff]
    %v73 = vld [vmem:[%s0 + $0x1a0] sm:$0xff]
    %v74 = vld [vmem:[%s0 + $0x1a8] sm:$0xff]
    %v75 = vld [vmem:[%s0 + $0x1b0] sm:$0xff]
    %v76 = vld [vmem:[%s0 + $0x1b8] sm:$0xff]
    %v77 = vld [vmem:[%s0 + $0x1c0] sm:$0xff]
    %v78 = vld [vmem:[%s0 + $0x1c8] sm:$0xff]
    %v79 = vld [vmem:[%s0 + $0x1d0] sm:$0xff]
    %v80 = vld [vmem:[%s0 + $0x1d8] sm:$0xff]
    %v81 = vld [vmem:[%s0 + $0x1e0] sm:$0xff]
    %v82 = vld [vmem:[%s0 + $0x1e8] sm:$0xff]
    %v83 = vld [vmem:[%s0 + $0x1f0] sm:$0xff]
    %v84 = vld [vmem:[%s0 + $0x1f8] sm:$0xff]
    %v85 = vld [vmem:[%s1] sm:$0xff]
    %v86 = vld [vmem:[%s1 + $0x8] sm:$0xff]
    %v87 = vld [vmem:[%s1 + $0x10] sm:$0xff]
    %v88 = vld [vmem:[%s1 + $0x18] sm:$0xff]
    %v89 = vld [vmem:[%s1 + $0x20] sm:$0xff]
    %v90 = vld [vmem:[%s1 + $0x28] sm:$0xff]
    %v91 = vld [vmem:[%s1 + $0x30] sm:$0xff]
    %v92 = vld [vmem:[%s1 + $0x38] sm:$0xff]
    %v93 = vld [vmem:[%s1 + $0x40] sm:$0xff]
    %v94 = vld [vmem:[%s1 + $0x48] sm:$0xff]
    %v95 = vld [vmem:[%s1 + $0x50] sm:$0xff]
    %v96 = vld [vmem:[%s1 + $0x58] sm:$0xff]
    %v97 = vld [vmem:[%s1 + $0x60] sm:$0xff]
    %v98 = vld [vmem:[%s1 + $0x68] sm:$0xff]
    %v99 = vld [vmem:[%s1 + $0x70] sm:$0xff]
    %v100 = vld [vmem:[%s1 + $0x78] sm:$0xff]
    %v101 = vld [vmem:[%s1 + $0x80] sm:$0xff]
    %v102 = vld [vmem:[%s1 + $0x88] sm:$0xff]
    %v103 = vld [vmem:[%s1 + $0x90] sm:$0xff]
    %v104 = vld [vmem:[%s1 + $0x98] sm:$0xff]
    %v105 = vld [vmem:[%s1 + $0xa0] sm:$0xff]
    %v106 = vld [vmem:[%s1 + $0xa8] sm:$0xff]
    %v107 = vld [vmem:[%s1 + $0xb0] sm:$0xff]
    %v108 = vld [vmem:[%s1 + $0xb8] sm:$0xff]
    %v109 = vld [vmem:[%s1 + $0xc0] sm:$0xff]
    %v110 = vld [vmem:[%s1 + $0xc8] sm:$0xff]
    %v111 = vld [vmem:[%s1 + $0xd0] sm:$0xff]
    %v112 = vld [vmem:[%s1 + $0xd8] sm:$0xff]
    %v113 = vld [vmem:[%s1 + $0xe0] sm:$0xff]
    %v114 = vld [vmem:[%s1 + $0xe8] sm:$0xff]
    %v115 = vld [vmem:[%s1 + $0xf0] sm:$0xff]
    %v116 = vld [vmem:[%s1 + $0xf8] sm:$0xff]
    %v117 = vld [vmem:[%s1 + $0x100] sm:$0xff]
    %v118 = vld [vmem:[%s1 + $0x108] sm:$0xff]
    %v119 = vld [vmem:[%s1 + $0x110] sm:$0xff]
    %v120 = vld [vmem:[%s1 + $0x118] sm:$0xff]
    %v121 = vld [vmem:[%s1 + $0x120] sm:$0xff]
    %v122 = vld [vmem:[%s1 + $0x128] sm:$0xff]
    %v123 = vld [vmem:[%s1 + $0x130] sm:$0xff]
    %v124 = vld [vmem:[%s1 + $0x138] sm:$0xff]
    %v125 = vld [vmem:[%s1 + $0x140] sm:$0xff]
    %v126 = vld [vmem:[%s1 + $0x148] sm:$0xff]
    %v127 = vld [vmem:[%s1 + $0x150] sm:$0xff]
    %v128 = vld [vmem:[%s1 + $0x158] sm:$0xff]
    %v129 = vld [vmem:[%s1 + $0x160] sm:$0xff]
    %v130 = vld [vmem:[%s1 + $0x168] sm:$0xff]
    %v131 = vld [vmem:[%s1 + $0x170] sm:$0xff]
    %v132 = vld [vmem:[%s1 + $0x178] sm:$0xff]
    %v133 = vld [vmem:[%s1 + $0x180] sm:$0xff]
    %v134 = vld [vmem:[%s1 + $0x188] sm:$0xff]
    %vm135 = vcmask 130048
    %v137 = vsel %vm135, %v24, 0
    %v140 = vsel %vm135, %v28, 0
    %v143 = vsel %vm135, %v32, 0
    %v146 = vsel %vm135, %v36, 0
    %v149 = vsel %vm135, %v40, 0
    %v152 = vsel %vm135, %v44, 0
    %v155 = vsel %vm135, %v48, 0
    %v158 = vsel %vm135, %v52, 0
    %v161 = vsel %vm135, %v56, 0
    %v164 = vsel %vm135, %v60, 0
    %v167 = vsel %vm135, %v64, 0
    %v170 = vsel %vm135, %v68, 0
    %v173 = vsel %vm135, %v72, 0
    %v176 = vsel %vm135, %v76, 0
    %v179 = vsel %vm135, %v80, 0
    %v182 = vsel %vm135, %v84, 0
    %184 = vmatpush.msra.mxu0 %v100
    %185 = vmatpush.msra.mxu0 %v99
    %186 = vmatpush.msra.mxu0 %v98
    %187 = vmatpush.msra.mxu0 %v97
    %188 = vmatpush.msra.mxu0 %v96
    %189 = vmatpush.msra.mxu0 %v95
    %190 = vmatpush.msra.mxu0 %v94
    %191 = vmatpush.msra.mxu0 %v93
    %192 = vmatpush.msra.mxu0 %v92
    %193 = vmatpush.msra.mxu0 %v91
    %194 = vmatpush.msra.mxu0 %v90
    %195 = vmatpush.msra.mxu0 %v89
    %196 = vmatpush.msra.mxu0 %v88
    %197 = vmatpush.msra.mxu0 %v87
    %198 = vmatpush.msra.mxu0 %v86
    %199 = vmatpush.msra.mxu0 %v85
    %200 = vmatmul.f32.gmra.mxu0 %v21
    %v201 = vpop.f32.mrf.mxu0
    %v202 = vadd.f32 0.0, %v201
    %203 = vmatmul.f32.gmra.mxu0 %v25
    %v204 = vpop.f32.mrf.mxu0
    %v205 = vadd.f32 0.0, %v204
    %206 = vmatmul.f32.gmra.mxu0 %v29
    %v207 = vpop.f32.mrf.mxu0
    %v208 = vadd.f32 0.0, %v207
    %209 = vmatmul.f32.gmra.mxu0 %v33
    %v210 = vpop.f32.mrf.mxu0
    %v211 = vadd.f32 0.0, %v210
    %212 = vmatmul.f32.gmra.mxu0 %v37
    %v213 = vpop.f32.mrf.mxu0
    %v214 = vadd.f32 0.0, %v213
    %215 = vmatmul.f32.gmra.mxu0 %v41
    %v216 = vpop.f32.mrf.mxu0
    %v217 = vadd.f32 0.0, %v216
    %218 = vmatmul.f32.gmra.mxu0 %v45
    %v219 = vpop.f32.mrf.mxu0
    %v220 = vadd.f32 0.0, %v219
    %221 = vmatmul.f32.gmra.mxu0 %v49
    %v222 = vpop.f32.mrf.mxu0
    %v223 = vadd.f32 0.0, %v222
    %224 = vmatmul.f32.gmra.mxu0 %v53
    %v225 = vpop.f32.mrf.mxu0
    %v226 = vadd.f32 0.0, %v225
    %227 = vmatmul.f32.gmra.mxu0 %v57
    %v228 = vpop.f32.mrf.mxu0
    %v229 = vadd.f32 0.0, %v228
    %230 = vmatmul.f32.gmra.mxu0 %v61
    %v231 = vpop.f32.mrf.mxu0
    %v232 = vadd.f32 0.0, %v231
    %233 = vmatmul.f32.gmra.mxu0 %v65
    %v234 = vpop.f32.mrf.mxu0
    %v235 = vadd.f32 0.0, %v234
    %236 = vmatmul.f32.gmra.mxu0 %v69
    %v237 = vpop.f32.mrf.mxu0
    %v238 = vadd.f32 0.0, %v237
    %239 = vmatmul.f32.gmra.mxu0 %v73
    %v240 = vpop.f32.mrf.mxu0
    %v241 = vadd.f32 0.0, %v240
    %242 = vmatmul.f32.gmra.mxu0 %v77
    %v243 = vpop.f32.mrf.mxu0
    %v244 = vadd.f32 0.0, %v243
    %245 = vmatmul.f32.gmra.mxu0 %v81
    %v246 = vpop.f32.mrf.mxu0
    %v247 = vadd.f32 0.0, %v246
    %248 = vdwg.mxu0
    %249 = vmatpush.msra.mxu0 %v116
    %250 = vmatpush.msra.mxu0 %v115
    %251 = vmatpush.msra.mxu0 %v114
    %252 = vmatpush.msra.mxu0 %v113
    %253 = vmatpush.msra.mxu0 %v112
    %254 = vmatpush.msra.mxu0 %v111
    %255 = vmatpush.msra.mxu0 %v110
    %256 = vmatpush.msra.mxu0 %v109
    %257 = vmatpush.msra.mxu0 %v108
    %258 = vmatpush.msra.mxu0 %v107
    %259 = vmatpush.msra.mxu0 %v106
    %260 = vmatpush.msra.mxu0 %v105
    %261 = vmatpush.msra.mxu0 %v104
    %262 = vmatpush.msra.mxu0 %v103
    %263 = vmatpush.msra.mxu0 %v102
    %264 = vmatpush.msra.mxu0 %v101
    %265 = vmatmul.f32.gmra.mxu0 %v22
    %v266 = vpop.f32.mrf.mxu0
    %v267 = vadd.f32 %v202, %v266
    %268 = vmatmul.f32.gmra.mxu0 %v26
    %v269 = vpop.f32.mrf.mxu0
    %v270 = vadd.f32 %v205, %v269
    %271 = vmatmul.f32.gmra.mxu0 %v30
    %v272 = vpop.f32.mrf.mxu0
    %v273 = vadd.f32 %v208, %v272
    %274 = vmatmul.f32.gmra.mxu0 %v34
    %v275 = vpop.f32.mrf.mxu0
    %v276 = vadd.f32 %v211, %v275
    %277 = vmatmul.f32.gmra.mxu0 %v38
    %v278 = vpop.f32.mrf.mxu0
    %v279 = vadd.f32 %v214, %v278
    %280 = vmatmul.f32.gmra.mxu0 %v42
    %v281 = vpop.f32.mrf.mxu0
    %v282 = vadd.f32 %v217, %v281
    %283 = vmatmul.f32.gmra.mxu0 %v46
    %v284 = vpop.f32.mrf.mxu0
    %v285 = vadd.f32 %v220, %v284
    %286 = vmatmul.f32.gmra.mxu0 %v50
    %v287 = vpop.f32.mrf.mxu0
    %v288 = vadd.f32 %v223, %v287
    %289 = vmatmul.f32.gmra.mxu0 %v54
    %v290 = vpop.f32.mrf.mxu0
    %v291 = vadd.f32 %v226, %v290
    %292 = vmatmul.f32.gmra.mxu0 %v58
    %v293 = vpop.f32.mrf.mxu0
    %v294 = vadd.f32 %v229, %v293
    %295 = vmatmul.f32.gmra.mxu0 %v62
    %v296 = vpop.f32.mrf.mxu0
    %v297 = vadd.f32 %v232, %v296
    %298 = vmatmul.f32.gmra.mxu0 %v66
    %v299 = vpop.f32.mrf.mxu0
    %v300 = vadd.f32 %v235, %v299
    %301 = vmatmul.f32.gmra.mxu0 %v70
    %v302 = vpop.f32.mrf.mxu0
    %v303 = vadd.f32 %v238, %v302
    %304 = vmatmul.f32.gmra.mxu0 %v74
    %v305 = vpop.f32.mrf.mxu0
    %v306 = vadd.f32 %v241, %v305
    %307 = vmatmul.f32.gmra.mxu0 %v78
    %v308 = vpop.f32.mrf.mxu0
    %v309 = vadd.f32 %v244, %v308
    %310 = vmatmul.f32.gmra.mxu0 %v82
    %v311 = vpop.f32.mrf.mxu0
    %v312 = vadd.f32 %v247, %v311
    %313 = vdwg.mxu0
    %314 = vmatpush.msra.mxu0 %v132
    %315 = vmatpush.msra.mxu0 %v131
    %316 = vmatpush.msra.mxu0 %v130
    %317 = vmatpush.msra.mxu0 %v129
    %318 = vmatpush.msra.mxu0 %v128
    %319 = vmatpush.msra.mxu0 %v127
    %320 = vmatpush.msra.mxu0 %v126
    %321 = vmatpush.msra.mxu0 %v125
    %322 = vmatpush.msra.mxu0 %v124
    %323 = vmatpush.msra.mxu0 %v123
    %324 = vmatpush.msra.mxu0 %v122
    %325 = vmatpush.msra.mxu0 %v121
    %326 = vmatpush.msra.mxu0 %v120
    %327 = vmatpush.msra.mxu0 %v119
    %328 = vmatpush.msra.mxu0 %v118
    %329 = vmatpush.msra.mxu0 %v117
    %330 = vmatmul.f32.gmra.mxu0 %v23
    %v331 = vpop.f32.mrf.mxu0
    %v332 = vadd.f32 %v267, %v331
    %333 = vmatmul.f32.gmra.mxu0 %v27
    %v334 = vpop.f32.mrf.mxu0
    %v335 = vadd.f32 %v270, %v334
    %336 = vmatmul.f32.gmra.mxu0 %v31
    %v337 = vpop.f32.mrf.mxu0
    %v338 = vadd.f32 %v273, %v337
    %339 = vmatmul.f32.gmra.mxu0 %v35
    %v340 = vpop.f32.mrf.mxu0
    %v341 = vadd.f32 %v276, %v340
    %342 = vmatmul.f32.gmra.mxu0 %v39
    %v343 = vpop.f32.mrf.mxu0
    %v344 = vadd.f32 %v279, %v343
    %345 = vmatmul.f32.gmra.mxu0 %v43
    %v346 = vpop.f32.mrf.mxu0
    %v347 = vadd.f32 %v282, %v346
    %348 = vmatmul.f32.gmra.mxu0 %v47
    %v349 = vpop.f32.mrf.mxu0
    %v350 = vadd.f32 %v285, %v349
    %351 = vmatmul.f32.gmra.mxu0 %v51
    %v352 = vpop.f32.mrf.mxu0
    %v353 = vadd.f32 %v288, %v352
    %354 = vmatmul.f32.gmra.mxu0 %v55
    %v355 = vpop.f32.mrf.mxu0
    %v356 = vadd.f32 %v291, %v355
    %357 = vmatmul.f32.gmra.mxu0 %v59
    %v358 = vpop.f32.mrf.mxu0
    %v359 = vadd.f32 %v294, %v358
    %360 = vmatmul.f32.gmra.mxu0 %v63
    %v361 = vpop.f32.mrf.mxu0
    %v362 = vadd.f32 %v297, %v361
    %363 = vmatmul.f32.gmra.mxu0 %v67
    %v364 = vpop.f32.mrf.mxu0
    %v365 = vadd.f32 %v300, %v364
    %366 = vmatmul.f32.gmra.mxu0 %v71
    %v367 = vpop.f32.mrf.mxu0
    %v368 = vadd.f32 %v303, %v367
    %369 = vmatmul.f32.gmra.mxu0 %v75
    %v370 = vpop.f32.mrf.mxu0
    %v371 = vadd.f32 %v306, %v370
    %372 = vmatmul.f32.gmra.mxu0 %v79
    %v373 = vpop.f32.mrf.mxu0
    %v374 = vadd.f32 %v309, %v373
    %375 = vmatmul.f32.gmra.mxu0 %v83
    %v376 = vpop.f32.mrf.mxu0
    %v377 = vadd.f32 %v312, %v376
    %378 = vdwg.mxu0
    %379 = vmatpush.msra.mxu0 0.0
    %380 = vmatpush.msra.mxu0 0.0
    %381 = vmatpush.msra.mxu0 0.0
    %382 = vmatpush.msra.mxu0 0.0
    %383 = vmatpush.msra.mxu0 0.0
    %384 = vmatpush.msra.mxu0 0.0
    %385 = vmatpush.msra.mxu0 0.0
    %386 = vmatpush.msra.mxu0 0.0
    %387 = vmatpush.msra.mxu0 0.0
    %388 = vmatpush.msra.mxu0 0.0
    %389 = vmatpush.msra.mxu0 0.0
    %390 = vmatpush.msra.mxu0 0.0
    %391 = vmatpush.msra.mxu0 0.0
    %392 = vmatpush.msra.mxu0 0.0
    %393 = vmatpush.msra.mxu0 %v134
    %394 = vmatpush.msra.mxu0 %v133
    %395 = vmatmul.f32.gmra.mxu0 %v137
    %v396 = vpop.f32.mrf.mxu0
    %v397 = vadd.f32 %v332, %v396
    %398 = vmatmul.f32.gmra.mxu0 %v140
    %v399 = vpop.f32.mrf.mxu0
    %v400 = vadd.f32 %v335, %v399
    %401 = vmatmul.f32.gmra.mxu0 %v143
    %v402 = vpop.f32.mrf.mxu0
    %v403 = vadd.f32 %v338, %v402
    %404 = vmatmul.f32.gmra.mxu0 %v146
    %v405 = vpop.f32.mrf.mxu0
    %v406 = vadd.f32 %v341, %v405
    %407 = vmatmul.f32.gmra.mxu0 %v149
    %v408 = vpop.f32.mrf.mxu0
    %v409 = vadd.f32 %v344, %v408
    %410 = vmatmul.f32.gmra.mxu0 %v152
    %v411 = vpop.f32.mrf.mxu0
    %v412 = vadd.f32 %v347, %v411
    %413 = vmatmul.f32.gmra.mxu0 %v155
    %v414 = vpop.f32.mrf.mxu0
    %v415 = vadd.f32 %v350, %v414
    %416 = vmatmul.f32.gmra.mxu0 %v158
    %v417 = vpop.f32.mrf.mxu0
    %v418 = vadd.f32 %v353, %v417
    %419 = vmatmul.f32.gmra.mxu0 %v161
    %v420 = vpop.f32.mrf.mxu0
    %v421 = vadd.f32 %v356, %v420
    %422 = vmatmul.f32.gmra.mxu0 %v164
    %v423 = vpop.f32.mrf.mxu0
    %v424 = vadd.f32 %v359, %v423
    %425 = vmatmul.f32.gmra.mxu0 %v167
    %v426 = vpop.f32.mrf.mxu0
    %v427 = vadd.f32 %v362, %v426
    %428 = vmatmul.f32.gmra.mxu0 %v170
    %v429 = vpop.f32.mrf.mxu0
    %v430 = vadd.f32 %v365, %v429
    %431 = vmatmul.f32.gmra.mxu0 %v173
    %v432 = vpop.f32.mrf.mxu0
    %v433 = vadd.f32 %v368, %v432
    %434 = vmatmul.f32.gmra.mxu0 %v176
    %v435 = vpop.f32.mrf.mxu0
    %v436 = vadd.f32 %v371, %v435
    %437 = vmatmul.f32.gmra.mxu0 %v179
    %v438 = vpop.f32.mrf.mxu0
    %v439 = vadd.f32 %v374, %v438
    %440 = vmatmul.f32.gmra.mxu0 %v182
    %v441 = vpop.f32.mrf.mxu0
    %v442 = vadd.f32 %v377, %v441
    %443 = vdwg.mxu0
    %v444 = vmax.f32 %v397, %v403
    %v445 = vmax.f32 %v400, %v406
    %v446 = vmax.f32 %v421, %v427
    %v447 = vmax.f32 %v424, %v430
    %v448 = vmax.f32 %v409, %v415
    %v449 = vmax.f32 %v412, %v418
    %v450 = vmax.f32 %v433, %v439
    %v451 = vmax.f32 %v436, %v442
    %v452 = vmax.f32 %v444, %v448
    %v453 = vmax.f32 %v445, %v449
    %v454 = vmax.f32 %v446, %v450
    %v455 = vmax.f32 %v447, %v451
    %v456 = vld [vmem:[%s2] sm:$0x1]
    %v458 = vperm.slane %v456, 0
    %v460 = vadd.f32 %v452, %v458
    %v461 = vadd.f32 %v453, %v458
    %v462 = vadd.f32 %v454, %v458
    %v463 = vadd.f32 %v455, %v458
    %v464 = vmax.f32 %v460, 0.0
    %v465 = vmax.f32 %v461, 0.0
    %v466 = vmax.f32 %v462, 0.0
    %v467 = vmax.f32 %v463, 0.0
    %v468 = vld [vmem:[%s3] sm:$0xff]
    %v469 = vld [vmem:[%s3 + $0x8] sm:$0xff]
    %v470 = vld [vmem:[%s3 + $0x10] sm:$0xff]
    %v471 = vld [vmem:[%s3 + $0x18] sm:$0xff]
    %v472 = vld [vmem:[%s3 + $0x20] sm:$0xff]
    %v473 = vld [vmem:[%s3 + $0x28] sm:$0xff]
    %v474 = vld [vmem:[%s3 + $0x30] sm:$0xff]
    %v475 = vld [vmem:[%s3 + $0x38] sm:$0xff]
    %v476 = vld [vmem:[%s3 + $0x40] sm:$0xff]
    %v477 = vld [vmem:[%s3 + $0x48] sm:$0xff]
    %v478 = vld [vmem:[%s3 + $0x50] sm:$0xff]
    %v479 = vld [vmem:[%s3 + $0x58] sm:$0xff]
    %v480 = vld [vmem:[%s3 + $0x60] sm:$0xff]
    %v481 = vld [vmem:[%s3 + $0x68] sm:$0xff]
    %v482 = vld [vmem:[%s3 + $0x70] sm:$0xff]
    %v483 = vld [vmem:[%s3 + $0x78] sm:$0xff]
    %v484 = vld [vmem:[%s3 + $0x80] sm:$0xff]
    %v485 = vld [vmem:[%s3 + $0x88] sm:$0xff]
    %v486 = vld [vmem:[%s3 + $0x90] sm:$0xff]
    %v487 = vld [vmem:[%s3 + $0x98] sm:$0xff]
    %v488 = vld [vmem:[%s3 + $0xa0] sm:$0xff]
    %v489 = vld [vmem:[%s3 + $0xa8] sm:$0xff]
    %v490 = vld [vmem:[%s3 + $0xb0] sm:$0xff]
    %v491 = vld [vmem:[%s3 + $0xb8] sm:$0xff]
    %v492 = vld [vmem:[%s3 + $0xc0] sm:$0xff]
    %v493 = vld [vmem:[%s3 + $0xc8] sm:$0xff]
    %v494 = vld [vmem:[%s3 + $0xd0] sm:$0xff]
    %v495 = vld [vmem:[%s3 + $0xd8] sm:$0xff]
    %v496 = vld [vmem:[%s3 + $0xe0] sm:$0xff]
    %v497 = vld [vmem:[%s3 + $0xe8] sm:$0xff]
    %v498 = vld [vmem:[%s3 + $0xf0] sm:$0xff]
    %v499 = vld [vmem:[%s3 + $0xf8] sm:$0xff]
    %v500 = vld [vmem:[%s3 + $0x100] sm:$0xff]
    %v501 = vld [vmem:[%s3 + $0x108] sm:$0xff]
    %v502 = vld [vmem:[%s3 + $0x110] sm:$0xff]
    %v503 = vld [vmem:[%s3 + $0x118] sm:$0xff]
    %v504 = vld [vmem:[%s3 + $0x120] sm:$0xff]
    %v505 = vld [vmem:[%s3 + $0x128] sm:$0xff]
    %v506 = vld [vmem:[%s3 + $0x130] sm:$0xff]
    %v507 = vld [vmem:[%s3 + $0x138] sm:$0xff]
    %v508 = vld [vmem:[%s3 + $0x140] sm:$0xff]
    %v509 = vld [vmem:[%s3 + $0x148] sm:$0xff]
    %v510 = vld [vmem:[%s3 + $0x150] sm:$0xff]
    %v511 = vld [vmem:[%s3 + $0x158] sm:$0xff]
    %v512 = vld [vmem:[%s3 + $0x160] sm:$0xff]
    %v513 = vld [vmem:[%s3 + $0x168] sm:$0xff]
    %v514 = vld [vmem:[%s3 + $0x170] sm:$0xff]
    %v515 = vld [vmem:[%s3 + $0x178] sm:$0xff]
    %v516 = vld [vmem:[%s3 + $0x180] sm:$0xff]
    %v517 = vld [vmem:[%s3 + $0x188] sm:$0xff]
    %v518 = vld [vmem:[%s3 + $0x190] sm:$0xff]
    %v519 = vld [vmem:[%s3 + $0x198] sm:$0xff]
    %v520 = vld [vmem:[%s3 + $0x1a0] sm:$0xff]
    %v521 = vld [vmem:[%s3 + $0x1a8] sm:$0xff]
    %v522 = vld [vmem:[%s3 + $0x1b0] sm:$0xff]
    %v523 = vld [vmem:[%s3 + $0x1b8] sm:$0xff]
    %v524 = vld [vmem:[%s3 + $0x1c0] sm:$0xff]
    %v525 = vld [vmem:[%s3 + $0x1c8] sm:$0xff]
    %v526 = vld [vmem:[%s3 + $0x1d0] sm:$0xff]
    %v527 = vld [vmem:[%s3 + $0x1d8] sm:$0xff]
    %v528 = vld [vmem:[%s3 + $0x1e0] sm:$0xff]
    %v529 = vld [vmem:[%s3 + $0x1e8] sm:$0xff]
    %v530 = vld [vmem:[%s3 + $0x1f0] sm:$0xff]
    %v531 = vld [vmem:[%s3 + $0x1f8] sm:$0xff]
    %v534 = vrot.slane %v464, 1
    %vm535 = vcmask 1041409
    %v536 = vsel %vm535, %v466, %v534
    %vm537 = vcmask 261120
    %v538 = vsel %vm537, %v536, 0
    %540 = vmatpush.msra.mxu0 0.0
    %541 = vmatpush.msra.mxu0 0.0
    %542 = vmatpush.msra.mxu0 0.0
    %543 = vmatpush.msra.mxu0 0.0
    %544 = vmatpush.msra.mxu0 0.0
    %545 = vmatpush.msra.mxu0 0.0
    %546 = vmatpush.msra.mxu0 0.0
    %547 = vmatpush.msra.mxu0 0.0
    %548 = vmatpush.msra.mxu0 0.0
    %549 = vmatpush.msra.mxu0 0.0
    %550 = vmatpush.msra.mxu0 0.0
    %551 = vmatpush.msra.mxu0 0.0
    %552 = vmatpush.msra.mxu0 %v475
    %553 = vmatpush.msra.mxu0 %v474
    %554 = vmatpush.msra.mxu0 %v473
    %555 = vmatpush.msra.mxu0 %v472
    %556 = vmatmul.f32.gmra.mxu0 %v538
    %v557 = vpop.f32.mrf.mxu0
    %v558 = vadd.f32 0.0, %v557
    %559 = vdwg.mxu0
    %v560 = vrot.slane %v466, 7
    %v561 = vsel %vm535, %v560, %v464
    %v562 = vsel %vm537, %v561, 0
    %564 = vmatpush.msra.mxu0 0.0
    %565 = vmatpush.msra.mxu0 0.0
    %566 = vmatpush.msra.mxu0 0.0
    %567 = vmatpush.msra.mxu0 0.0
    %568 = vmatpush.msra.mxu0 0.0
    %569 = vmatpush.msra.mxu0 0.0
    %570 = vmatpush.msra.mxu0 0.0
    %571 = vmatpush.msra.mxu0 0.0
    %572 = vmatpush.msra.mxu0 0.0
    %573 = vmatpush.msra.mxu0 0.0
    %574 = vmatpush.msra.mxu0 0.0
    %575 = vmatpush.msra.mxu0 0.0
    %576 = vmatpush.msra.mxu0 %v471
    %577 = vmatpush.msra.mxu0 %v470
    %578 = vmatpush.msra.mxu0 %v469
    %579 = vmatpush.msra.mxu0 %v468
    %580 = vmatmul.f32.gmra.mxu0 %v562
    %v581 = vpop.f32.mrf.mxu0
    %v582 = vadd.f32 %v558, %v581
    %583 = vdwg.mxu0
    %v584 = vrot.slane %v464, 2
    %v585 = vrot.slane %v466, 1
    %v586 = vsel %vm535, %v585, %v584
    %v587 = vsel %vm537, %v586, 0
    %589 = vmatpush.msra.mxu0 0.0
    %590 = vmatpush.msra.mxu0 0.0
    %591 = vmatpush.msra.mxu0 0.0
    %592 = vmatpush.msra.mxu0 0.0
    %593 = vmatpush.msra.mxu0 0.0
    %594 = vmatpush.msra.mxu0 0.0
    %595 = vmatpush.msra.mxu0 0.0
    %596 = vmatpush.msra.mxu0 0.0
    %597 = vmatpush.msra.mxu0 0.0
    %598 = vmatpush.msra.mxu0 0.0
    %599 = vmatpush.msra.mxu0 0.0
    %600 = vmatpush.msra.mxu0 0.0
    %601 = vmatpush.msra.mxu0 %v479
    %602 = vmatpush.msra.mxu0 %v478
    %603 = vmatpush.msra.mxu0 %v477
    %604 = vmatpush.msra.mxu0 %v476
    %605 = vmatmul.f32.gmra.mxu0 %v587
    %v606 = vpop.f32.mrf.mxu0
    %v607 = vadd.f32 0.0, %v606
    %608 = vdwg.mxu0
    %v609 = vadd.f32 %v582, %v607
    %v610 = vrot.slane %v464, 3
    %v611 = vrot.slane %v466, 2
    %v612 = vsel %vm535, %v611, %v610
    %v613 = vsel %vm537, %v612, 0
    %615 = vmatpush.msra.mxu0 0.0
    %616 = vmatpush.msra.mxu0 0.0
    %617 = vmatpush.msra.mxu0 0.0
    %618 = vmatpush.msra.mxu0 0.0
    %619 = vmatpush.msra.mxu0 0.0
    %620 = vmatpush.msra.mxu0 0.0
    %621 = vmatpush.msra.mxu0 0.0
    %622 = vmatpush.msra.mxu0 0.0
    %623 = vmatpush.msra.mxu0 0.0
    %624 = vmatpush.msra.mxu0 0.0
    %625 = vmatpush.msra.mxu0 0.0
    %626 = vmatpush.msra.mxu0 0.0
    %627 = vmatpush.msra.mxu0 %v483
    %628 = vmatpush.msra.mxu0 %v482
    %629 = vmatpush.msra.mxu0 %v481
    %630 = vmatpush.msra.mxu0 %v480
    %631 = vmatmul.f32.gmra.mxu0 %v613
    %v632 = vpop.f32.mrf.mxu0
    %v633 = vadd.f32 0.0, %v632
    %634 = vdwg.mxu0
    %v635 = vadd.f32 %v609, %v633
    %v636 = vrot.slane %v464, 4
    %v637 = vrot.slane %v466, 3
    %v638 = vsel %vm535, %v637, %v636
    %v639 = vsel %vm537, %v638, 0
    %641 = vmatpush.msra.mxu0 0.0
    %642 = vmatpush.msra.mxu0 0.0
    %643 = vmatpush.msra.mxu0 0.0
    %644 = vmatpush.msra.mxu0 0.0
    %645 = vmatpush.msra.mxu0 0.0
    %646 = vmatpush.msra.mxu0 0.0
    %647 = vmatpush.msra.mxu0 0.0
    %648 = vmatpush.msra.mxu0 0.0
    %649 = vmatpush.msra.mxu0 0.0
    %650 = vmatpush.msra.mxu0 0.0
    %651 = vmatpush.msra.mxu0 0.0
    %652 = vmatpush.msra.mxu0 0.0
    %653 = vmatpush.msra.mxu0 %v487
    %654 = vmatpush.msra.mxu0 %v486
    %655 = vmatpush.msra.mxu0 %v485
    %656 = vmatpush.msra.mxu0 %v484
    %657 = vmatmul.f32.gmra.mxu0 %v639
    %v658 = vpop.f32.mrf.mxu0
    %v659 = vadd.f32 0.0, %v658
    %660 = vdwg.mxu0
    %v661 = vadd.f32 %v635, %v659
    %v662 = vrot.slane %v464, 5
    %v663 = vrot.slane %v466, 4
    %v664 = vsel %vm535, %v663, %v662
    %v665 = vsel %vm537, %v664, 0
    %667 = vmatpush.msra.mxu0 0.0
    %668 = vmatpush.msra.mxu0 0.0
    %669 = vmatpush.msra.mxu0 0.0
    %670 = vmatpush.msra.mxu0 0.0
    %671 = vmatpush.msra.mxu0 0.0
    %672 = vmatpush.msra.mxu0 0.0
    %673 = vmatpush.msra.mxu0 0.0
    %674 = vmatpush.msra.mxu0 0.0
    %675 = vmatpush.msra.mxu0 0.0
    %676 = vmatpush.msra.mxu0 0.0
    %677 = vmatpush.msra.mxu0 0.0
    %678 = vmatpush.msra.mxu0 0.0
    %679 = vmatpush.msra.mxu0 %v491
    %680 = vmatpush.msra.mxu0 %v490
    %681 = vmatpush.msra.mxu0 %v489
    %682 = vmatpush.msra.mxu0 %v488
    %683 = vmatmul.f32.gmra.mxu0 %v665
    %v684 = vpop.f32.mrf.mxu0
    %v685 = vadd.f32 0.0, %v684
    %686 = vdwg.mxu0
    %v687 = vadd.f32 %v661, %v685
    %v688 = vrot.slane %v464, 6
    %v689 = vrot.slane %v466, 5
    %v690 = vsel %vm535, %v689, %v688
    %v691 = vsel %vm537, %v690, 0
    %693 = vmatpush.msra.mxu0 0.0
    %694 = vmatpush.msra.mxu0 0.0
    %695 = vmatpush.msra.mxu0 0.0
    %696 = vmatpush.msra.mxu0 0.0
    %697 = vmatpush.msra.mxu0 0.0
    %698 = vmatpush.msra.mxu0 0.0
    %699 = vmatpush.msra.mxu0 0.0
    %700 = vmatpush.msra.mxu0 0.0
    %701 = vmatpush.msra.mxu0 0.0
    %702 = vmatpush.msra.mxu0 0.0
    %703 = vmatpush.msra.mxu0 0.0
    %704 = vmatpush.msra.mxu0 0.0
    %705 = vmatpush.msra.mxu0 %v495
    %706 = vmatpush.msra.mxu0 %v494
    %707 = vmatpush.msra.mxu0 %v493
    %708 = vmatpush.msra.mxu0 %v492
    %709 = vmatmul.f32.gmra.mxu0 %v691
    %v710 = vpop.f32.mrf.mxu0
    %v711 = vadd.f32 0.0, %v710
    %712 = vdwg.mxu0
    %v713 = vadd.f32 %v687, %v711
    %v714 = vrot.slane %v464, 7
    %v715 = vrot.slane %v466, 6
    %v716 = vsel %vm535, %v715, %v714
    %v717 = vsel %vm537, %v716, 0
    %719 = vmatpush.msra.mxu0 0.0
    %720 = vmatpush.msra.mxu0 0.0
    %721 = vmatpush.msra.mxu0 0.0
    %722 = vmatpush.msra.mxu0 0.0
    %723 = vmatpush.msra.mxu0 0.0
    %724 = vmatpush.msra.mxu0 0.0
    %725 = vmatpush.msra.mxu0 0.0
    %726 = vmatpush.msra.mxu0 0.0
    %727 = vmatpush.msra.mxu0 0.0
    %728 = vmatpush.msra.mxu0 0.0
    %729 = vmatpush.msra.mxu0 0.0
    %730 = vmatpush.msra.mxu0 0.0
    %731 = vmatpush.msra.mxu0 %v499
    %732 = vmatpush.msra.mxu0 %v498
    %733 = vmatpush.msra.mxu0 %v497
    %734 = vmatpush.msra.mxu0 %v496
    %735 = vmatmul.f32.gmra.mxu0 %v717
    %v736 = vpop.f32.mrf.mxu0
    %v737 = vadd.f32 0.0, %v736
    %738 = vdwg.mxu0
    %v739 = vadd.f32 %v713, %v737
    %v742 = vrot.slane %v467, 7
    %v743 = vsel %vm535, %v742, %v465
    %v744 = vsel %vm537, %v743, 0
    %746 = vmatpush.msra.mxu0 0.0
    %747 = vmatpush.msra.mxu0 0.0
    %748 = vmatpush.msra.mxu0 0.0
    %749 = vmatpush.msra.mxu0 0.0
    %750 = vmatpush.msra.mxu0 0.0
    %751 = vmatpush.msra.mxu0 0.0
    %752 = vmatpush.msra.mxu0 0.0
    %753 = vmatpush.msra.mxu0 0.0
    %754 = vmatpush.msra.mxu0 0.0
    %755 = vmatpush.msra.mxu0 0.0
    %756 = vmatpush.msra.mxu0 0.0
    %757 = vmatpush.msra.mxu0 0.0
    %758 = vmatpush.msra.mxu0 %v503
    %759 = vmatpush.msra.mxu0 %v502
    %760 = vmatpush.msra.mxu0 %v501
    %761 = vmatpush.msra.mxu0 %v500
    %762 = vmatmul.f32.gmra.mxu0 %v744
    %v763 = vpop.f32.mrf.mxu0
    %v764 = vadd.f32 0.0, %v763
    %765 = vdwg.mxu0
    %v766 = vadd.f32 %v739, %v764
    %v767 = vrot.slane %v465, 1
    %v768 = vsel %vm535, %v467, %v767
    %v769 = vsel %vm537, %v768, 0
    %771 = vmatpush.msra.mxu0 0.0
    %772 = vmatpush.msra.mxu0 0.0
    %773 = vmatpush.msra.mxu0 0.0
    %774 = vmatpush.msra.mxu0 0.0
    %775 = vmatpush.msra.mxu0 0.0
    %776 = vmatpush.msra.mxu0 0.0
    %777 = vmatpush.msra.mxu0 0.0
    %778 = vmatpush.msra.mxu0 0.0
    %779 = vmatpush.msra.mxu0 0.0
    %780 = vmatpush.msra.mxu0 0.0
    %781 = vmatpush.msra.mxu0 0.0
    %782 = vmatpush.msra.mxu0 0.0
    %783 = vmatpush.msra.mxu0 %v507
    %784 = vmatpush.msra.mxu0 %v506
    %785 = vmatpush.msra.mxu0 %v505
    %786 = vmatpush.msra.mxu0 %v504
    %787 = vmatmul.f32.gmra.mxu0 %v769
    %v788 = vpop.f32.mrf.mxu0
    %v789 = vadd.f32 0.0, %v788
    %790 = vdwg.mxu0
    %v791 = vadd.f32 %v766, %v789
    %v792 = vrot.slane %v465, 2
    %v793 = vrot.slane %v467, 1
    %v794 = vsel %vm535, %v793, %v792
    %v795 = vsel %vm537, %v794, 0
    %797 = vmatpush.msra.mxu0 0.0
    %798 = vmatpush.msra.mxu0 0.0
    %799 = vmatpush.msra.mxu0 0.0
    %800 = vmatpush.msra.mxu0 0.0
    %801 = vmatpush.msra.mxu0 0.0
    %802 = vmatpush.msra.mxu0 0.0
    %803 = vmatpush.msra.mxu0 0.0
    %804 = vmatpush.msra.mxu0 0.0
    %805 = vmatpush.msra.mxu0 0.0
    %806 = vmatpush.msra.mxu0 0.0
    %807 = vmatpush.msra.mxu0 0.0
    %808 = vmatpush.msra.mxu0 0.0
    %809 = vmatpush.msra.mxu0 %v511
    %810 = vmatpush.msra.mxu0 %v510
    %811 = vmatpush.msra.mxu0 %v509
    %812 = vmatpush.msra.mxu0 %v508
    %813 = vmatmul.f32.gmra.mxu0 %v795
    %v814 = vpop.f32.mrf.mxu0
    %v815 = vadd.f32 0.0, %v814
    %816 = vdwg.mxu0
    %v817 = vadd.f32 %v791, %v815
    %v818 = vrot.slane %v465, 3
    %v819 = vrot.slane %v467, 2
    %v820 = vsel %vm535, %v819, %v818
    %v821 = vsel %vm537, %v820, 0
    %823 = vmatpush.msra.mxu0 0.0
    %824 = vmatpush.msra.mxu0 0.0
    %825 = vmatpush.msra.mxu0 0.0
    %826 = vmatpush.msra.mxu0 0.0
    %827 = vmatpush.msra.mxu0 0.0
    %828 = vmatpush.msra.mxu0 0.0
    %829 = vmatpush.msra.mxu0 0.0
    %830 = vmatpush.msra.mxu0 0.0
    %831 = vmatpush.msra.mxu0 0.0
    %832 = vmatpush.msra.mxu0 0.0
    %833 = vmatpush.msra.mxu0 0.0
    %834 = vmatpush.msra.mxu0 0.0
    %835 = vmatpush.msra.mxu0 %v515
    %836 = vmatpush.msra.mxu0 %v514
    %837 = vmatpush.msra.mxu0 %v513
    %838 = vmatpush.msra.mxu0 %v512
    %839 = vmatmul.f32.gmra.mxu0 %v821
    %v840 = vpop.f32.mrf.mxu0
    %v841 = vadd.f32 0.0, %v840
    %842 = vdwg.mxu0
    %v843 = vadd.f32 %v817, %v841
    %v844 = vrot.slane %v465, 4
    %v845 = vrot.slane %v467, 3
    %v846 = vsel %vm535, %v845, %v844
    %v847 = vsel %vm537, %v846, 0
    %849 = vmatpush.msra.mxu0 0.0
    %850 = vmatpush.msra.mxu0 0.0
    %851 = vmatpush.msra.mxu0 0.0
    %852 = vmatpush.msra.mxu0 0.0
    %853 = vmatpush.msra.mxu0 0.0
    %854 = vmatpush.msra.mxu0 0.0
    %855 = vmatpush.msra.mxu0 0.0
    %856 = vmatpush.msra.mxu0 0.0
    %857 = vmatpush.msra.mxu0 0.0
    %858 = vmatpush.msra.mxu0 0.0
    %859 = vmatpush.msra.mxu0 0.0
    %860 = vmatpush.msra.mxu0 0.0
    %861 = vmatpush.msra.mxu0 %v519
    %862 = vmatpush.msra.mxu0 %v518
    %863 = vmatpush.msra.mxu0 %v517
    %864 = vmatpush.msra.mxu0 %v516
    %865 = vmatmul.f32.gmra.mxu0 %v847
    %v866 = vpop.f32.mrf.mxu0
    %v867 = vadd.f32 0.0, %v866
    %868 = vdwg.mxu0
    %v869 = vadd.f32 %v843, %v867
    %v870 = vrot.slane %v465, 5
    %v871 = vrot.slane %v467, 4
    %v872 = vsel %vm535, %v871, %v870
    %v873 = vsel %vm537, %v872, 0
    %875 = vmatpush.msra.mxu0 0.0
    %876 = vmatpush.msra.mxu0 0.0
    %877 = vmatpush.msra.mxu0 0.0
    %878 = vmatpush.msra.mxu0 0.0
    %879 = vmatpush.msra.mxu0 0.0
    %880 = vmatpush.msra.mxu0 0.0
    %881 = vmatpush.msra.mxu0 0.0
    %882 = vmatpush.msra.mxu0 0.0
    %883 = vmatpush.msra.mxu0 0.0
    %884 = vmatpush.msra.mxu0 0.0
    %885 = vmatpush.msra.mxu0 0.0
    %886 = vmatpush.msra.mxu0 0.0
    %887 = vmatpush.msra.mxu0 %v523
    %888 = vmatpush.msra.mxu0 %v522
    %889 = vmatpush.msra.mxu0 %v521
    %890 = vmatpush.msra.mxu0 %v520
    %891 = vmatmul.f32.gmra.mxu0 %v873
    %v892 = vpop.f32.mrf.mxu0
    %v893 = vadd.f32 0.0, %v892
    %894 = vdwg.mxu0
    %v895 = vadd.f32 %v869, %v893
    %v896 = vrot.slane %v465, 6
    %v897 = vrot.slane %v467, 5
    %v898 = vsel %vm535, %v897, %v896
    %v899 = vsel %vm537, %v898, 0
    %901 = vmatpush.msra.mxu0 0.0
    %902 = vmatpush.msra.mxu0 0.0
    %903 = vmatpush.msra.mxu0 0.0
    %904 = vmatpush.msra.mxu0 0.0
    %905 = vmatpush.msra.mxu0 0.0
    %906 = vmatpush.msra.mxu0 0.0
    %907 = vmatpush.msra.mxu0 0.0
    %908 = vmatpush.msra.mxu0 0.0
    %909 = vmatpush.msra.mxu0 0.0
    %910 = vmatpush.msra.mxu0 0.0
    %911 = vmatpush.msra.mxu0 0.0
    %912 = vmatpush.msra.mxu0 0.0
    %913 = vmatpush.msra.mxu0 %v527
    %914 = vmatpush.msra.mxu0 %v526
    %915 = vmatpush.msra.mxu0 %v525
    %916 = vmatpush.msra.mxu0 %v524
    %917 = vmatmul.f32.gmra.mxu0 %v899
    %v918 = vpop.f32.mrf.mxu0
    %v919 = vadd.f32 0.0, %v918
    %920 = vdwg.mxu0
    %v921 = vadd.f32 %v895, %v919
    %v922 = vrot.slane %v465, 7
    %v923 = vrot.slane %v467, 6
    %v924 = vsel %vm535, %v923, %v922
    %v925 = vsel %vm537, %v924, 0
    %927 = vmatpush.msra.mxu0 0.0
    %928 = vmatpush.msra.mxu0 0.0
    %929 = vmatpush.msra.mxu0 0.0
    %930 = vmatpush.msra.mxu0 0.0
    %931 = vmatpush.msra.mxu0 0.0
    %932 = vmatpush.msra.mxu0 0.0
    %933 = vmatpush.msra.mxu0 0.0
    %934 = vmatpush.msra.mxu0 0.0
    %935 = vmatpush.msra.mxu0 0.0
    %936 = vmatpush.msra.mxu0 0.0
    %937 = vmatpush.msra.mxu0 0.0
    %938 = vmatpush.msra.mxu0 0.0
    %939 = vmatpush.msra.mxu0 %v531
    %940 = vmatpush.msra.mxu0 %v530
    %941 = vmatpush.msra.mxu0 %v529
    %942 = vmatpush.msra.mxu0 %v528
    %943 = vmatmul.f32.gmra.mxu0 %v925
    %v944 = vpop.f32.mrf.mxu0
    %v945 = vadd.f32 0.0, %v944
    %946 = vdwg.mxu0
    %v947 = vadd.f32 %v921, %v945
    %v948 = vld [vmem:[%s4] sm:$0x1]
    %v950 = vperm.slane %v948, 0
    %v952 = vadd.f32 %v947, %v950
    %953 = vst [vmem:[#allocation2] sm:$0x3] %v952
    // Predicated region
    $region22: #{cnn_forward.3} parent=1 // pred_check
      _
    $region23: #{cnn_forward.3} parent=1 // pred_check_branch
      %955 = sbr.rel (0) target = $region25
    $region24: #{cnn_forward.3} parent=1 // pred_region
      %957 = vsyncadd [#allocation3], 0
      %s959 = sshll.u32 [#allocation2], 4
      %s960 = int_to_ptr.vmem [resolvable:$true] %s959
      %s961 = sshll.u32 %s5, 4
      %s962 = int_to_ptr.hbm [resolvable:$true] %s961
      %964 = dma.vmem_to_hbm [thread:$0]  %s960, 32, %s962, [#allocation3]
    $region25: #{cnn_forward.3} parent=1 // pred_fallthru
      _
    // Predicated region
    $region26: #{cnn_forward.3} parent=1 // pred_check
      _
    $region27: #{cnn_forward.3} parent=1 // pred_check_branch
      %966 = sbr.rel (0) target = $region29
    $region28: #{cnn_forward.3} parent=1 // pred_region
      %968 = dma.done [#allocation3], 32
    $region29: #{cnn_forward.3} parent=1 // pred_fallthru
      _
    %969 = vsyncpa [#allocation3], 1

</llo_original>
